<compile_context>
chip_gen: v7x
topology: tpu7x:2x2x1
jax: 0.10.0
libtpu: 0.0.40
codegen_flags: <defaults>
</compile_context>

<pallas_src>
import functools

import jax
import jax.numpy as jnp
from jax import lax
from jax.experimental import pallas as pl
from jax.experimental.pallas import tpu as pltpu

LANES = 128      # vreg lane width
NSTAT = 9        # number of masked partial sums carried per tile
ROW_ALIGN = 32   # row padding / tiling granularity (int8 masks pack as (32,128))
ROW_CHUNK = 32   # rows per inner-loop step (bounds live vregs; no full-tile temps)


def _smooth_l1(x, y):
    d = jnp.abs(x - y)
    return jnp.where(d < 1.0, 0.5 * d * d, d - 0.5)


def _softplus(x):
    # stable log(1 + exp(x)) = max(x, 0) + log(1 + exp(-|x|))  (== 2-class CE)
    return jnp.maximum(x, 0.0) + jnp.log(1.0 + jnp.exp(-jnp.abs(x)))


def _fold(x):
    # (ROW_CHUNK, 128) -> (8, 128): pure VPU adds across whole vregs (no XLU).
    return x.reshape(ROW_CHUNK // 8, 8, LANES).sum(axis=0)


def _textloss_kernel(pred_ref, trm_ref, tclm_ref, trainm_ref,
                     sinm_ref, cosm_ref, radm_ref,
                     negce_ref, stats_ref):
    """Grid = (split, batch, tile).  Emits per-element negative CE and NSTAT
    (8,128) partial sums; the stats block stays resident across the tile axis
    and acts as the accumulator."""
    f32 = jnp.float32

    @pl.when(pl.program_id(2) == 0)
    def _():
        stats_ref[...] = jnp.zeros_like(stats_ref)

    tile_r = trm_ref.shape[1]
    n_chunks = tile_r // ROW_CHUNK

    def chunk_body(c, acc):
        r0 = pl.multiple_of(c * ROW_CHUNK, ROW_CHUNK)
        rs = pl.ds(r0, ROW_CHUNK)

        # preds stay in their HBM dtype (f32 or bf16); cast per chunk.
        p0 = pred_ref[0, 0, rs, :].astype(f32)   # tr logit class-0
        p1 = pred_ref[0, 1, rs, :].astype(f32)   # tr logit class-1
        p2 = pred_ref[0, 2, rs, :].astype(f32)   # tcl logit class-0
        p3 = pred_ref[0, 3, rs, :].astype(f32)   # tcl logit class-1
        p4 = pred_ref[0, 4, rs, :].astype(f32)   # sin prediction
        p5 = pred_ref[0, 5, rs, :].astype(f32)   # cos prediction
        p6 = pred_ref[0, 6, rs, :].astype(f32)   # radii prediction

        trm = trm_ref[0, rs, :].astype(f32)
        tclm = tclm_ref[0, rs, :].astype(f32)
        trainm = trainm_ref[0, rs, :].astype(f32)
        sinm = sinm_ref[0, rs, :].astype(f32)
        cosm = cosm_ref[0, rs, :].astype(f32)
        radm = radm_ref[0, rs, :].astype(f32)

        # ---- TR / TCL 2-class cross-entropies (softplus form) ---------------
        d_tr = p0 - p1
        ce_tr = _softplus(jnp.where(trm > 0.5, d_tr, -d_tr))
        d_tcl = p2 - p3
        ce_tcl = _softplus(jnp.where(tclm > 0.5, d_tcl, -d_tcl))

        pos = trm * trainm                     # tr_train_mask
        neg = (1.0 - trm) * trainm
        # Per-element negative CE with -1 sentinel.  CE >= 0 and padded
        # elements carry train_mask == 0, so sentinels / pads can never rank
        # above a real negative (n_neg <= #real negatives).  Do not change the
        # pad constants without revisiting this.
        negce_ref[0, rs, :] = jnp.where(neg > 0.5, ce_tr, -1.0)

        # ---- geometry branch -------------------------------------------------
        # NOTE: rsqrt(0) -> inf/NaN matches the torch reference (no eps there).
        scale = lax.rsqrt(p4 * p4 + p5 * p5)
        sinp = p4 * scale
        cosp = p5 * scale
        tcl_sel = tclm > 0.5
        # approx reciprocal runs on the EUP slot (free where the VPU binds);
        # ~2^-12 relative error feeding the radii smooth-L1.
        ratio = p6 * pl.reciprocal(jnp.where(tcl_sel, radm, 1.0), approx=True)

        terms = (
            pos,                                              # 0: n_pos
            pos * ce_tr,                                      # 1: CE sum over pos
            trainm,                                           # 2: n_train
            pos * ce_tcl,                                     # 3: tcl CE sum over tr_train
            tclm,                                             # 4: |tcl_mask|
            tclm * _smooth_l1(ratio, 1.0),                    # 5: radii smooth-L1 sum
            jnp.where(tcl_sel, _smooth_l1(sinp, sinm), 0.0),  # 6: sin smooth-L1 sum
            jnp.where(tcl_sel, _smooth_l1(cosp, cosm), 0.0),  # 7: cos smooth-L1 sum
            trainm * tclm,                                    # 8: |tcl_train_mask|
        )
        return tuple(a + _fold(t) for a, t in zip(acc, terms))

    zero = jnp.zeros((8, LANES), f32)
    acc = lax.fori_loop(0, n_chunks, chunk_body,
                        tuple(zero for _ in range(NSTAT)))
    for i in range(NSTAT):
        stats_ref[0, i] += acc[i]


def _choose_tiling(hw, tile_rows):
    """Return (rows, tile_r, n_tiles); prefer exact divisors so pad == 0."""
    rows = -(-hw // LANES)
    rows = -(-rows // ROW_ALIGN) * ROW_ALIGN
    tile_rows = max(ROW_ALIGN, (int(tile_rows) // ROW_ALIGN) * ROW_ALIGN)
    if rows <= tile_rows:
        return rows, rows, 1
    best = 0
    for cand in range(tile_rows, ROW_ALIGN - 1, -ROW_ALIGN):
        if rows % cand == 0:
            best = cand
            break
    if best >= max(ROW_ALIGN, tile_rows // 4):
        return rows, best, rows // best
    # Awkward row count: fall back to padding up to a multiple of tile_rows.
    n_tiles = -(-rows // tile_rows)
    return n_tiles * tile_rows, tile_rows, n_tiles


def _kth_largest(vals, k):
    """Exact k-th largest (dynamic k >= 1) of a non-negative f32 vector.

    For non-negative IEEE floats the int32 bit pattern is order preserving, so
    31 masked counts (bit-pattern bisection) replace a full XLA sort.  For
    k == 0 the result is meaningless (caller guards it)."""
    bits = lax.bitcast_convert_type(vals.astype(jnp.float32), jnp.int32)

    def body(i, t):
        cand = t | (jnp.int32(1) << (jnp.int32(30) - i.astype(jnp.int32)))
        cnt = jnp.sum((bits >= cand).astype(jnp.int32))
        return jnp.where(cnt >= k, cand, t)

    t = lax.fori_loop(0, 31, body, jnp.int32(0))
    return lax.bitcast_convert_type(t, jnp.float32)


@functools.partial(jax.jit, static_argnames=("negative_ratio", "tile_rows"))
def text_loss(inp, tr_mask, tcl_mask, sin_map, cos_map, radii_map, train_mask,
              negative_ratio=3.0, tile_rows=1024):
    """Returns (loss_tr, loss_tcl, loss_radii, loss_sin, loss_cos)."""
    B, C, H, W = inp.shape
    assert C == 7
    HW = H * W
    f32 = jnp.float32

    rows, tile_r, n_tiles = _choose_tiling(HW, tile_rows)
    pad = rows * LANES - HW
    # Second parallel grid axis keeps both v7x TensorCores busy at batch 1.
    n_split = 2 if (n_tiles >= 2 and n_tiles % 2 == 0) else 1
    tps = n_tiles // n_split

    # Keep NCHW channel-major layout: (B,7,H,W) -> (B,7,HW) is a free reshape;
    # dtype is preserved (no wrapper-side astype/HBM pass).
    preds = inp.reshape(B, 7, HW)
    if pad:
        preds = jnp.pad(preds, ((0, 0), (0, 0), (0, pad)), constant_values=1.0)
    preds = preds.reshape(B, 7, rows, LANES)

    def prep(m, dtype, pad_val):
        m = m.astype(dtype).reshape(B, HW)
        if pad:
            m = jnp.pad(m, ((0, 0), (0, pad)), constant_values=pad_val)
        return m.reshape(B, rows, LANES)

    i8 = jnp.int8
    trm = prep(tr_mask, i8, 0)
    tclm = prep(tcl_mask, i8, 0)
    trainm = prep(train_mask, i8, 0)      # padded train_mask==0 keeps pads inert
    sinm = prep(sin_map, sin_map.dtype, 0.0)
    cosm = prep(cos_map, cos_map.dtype, 0.0)
    radm = prep(radii_map, radii_map.dtype, 1.0)

    bytes_per_elem = (7 * preds.dtype.itemsize + 3 * trm.dtype.itemsize
                      + sinm.dtype.itemsize + cosm.dtype.itemsize
                      + radm.dtype.itemsize + 4)
    n_elem = B * rows * LANES
    cost = pl.CostEstimate(
        flops=70 * n_elem, transcendentals=5 * n_elem,
        bytes_accessed=n_elem * bytes_per_elem
        + n_split * B * NSTAT * 8 * LANES * 4)
    vmem_limit = int(min(64 * 2 ** 20,
                         max(32 * 2 ** 20,
                             3 * tile_r * LANES * bytes_per_elem)))

    pred_spec = pl.BlockSpec((1, 7, tile_r, LANES),
                             lambda s, b, t: (b, 0, s * tps + t, 0))
    map_spec = pl.BlockSpec((1, tile_r, LANES),
                            lambda s, b, t: (b, s * tps + t, 0))
    stats_spec = pl.BlockSpec((1, NSTAT, 8, LANES),
                              lambda s, b, t: (s * B + b, 0, 0, 0))

    negce, stats = pl.pallas_call(
        _textloss_kernel,
        out_shape=(jax.ShapeDtypeStruct((B, rows, LANES), f32),
                   jax.ShapeDtypeStruct((n_split * B, NSTAT, 8, LANES), f32)),
        grid=(n_split, B, tps),
        in_specs=[pred_spec] + [map_spec] * 6,
        out_specs=(map_spec, stats_spec),
        compiler_params=pltpu.CompilerParams(
            dimension_semantics=("parallel", "parallel", "arbitrary"),
            vmem_limit_bytes=vmem_limit),
        cost_estimate=cost,
    )(preds, trm, tclm, trainm, sinm, cosm, radm)

    s = stats.sum(axis=(0, 2, 3))        # (NSTAT,) global sums
    n_pos = s[0]
    pos_ce_sum = s[1]
    n_train = s[2]
    tcl_ce_sum = s[3]
    n_tcl = s[4]
    radii_sl1_sum = s[5]
    sin_sl1_sum = s[6]
    cos_sl1_sum = s[7]
    n_tcl_train = s[8]

    # ---- OHEM: exact dynamic-k top-k sum without a full sort -----------------
    # TODO(synk): the dynamic-k hard-negative selection has no clean in-kernel
    # Pallas equivalent; it is done host-side with an exact 31-step bit-pattern
    # bisection over the kernel-produced negce vector (replaces the old sort).
    n_neg_avail = n_train - n_pos
    has_pos = n_pos > 0.0
    n_neg = jnp.where(has_pos,
                      jnp.minimum(n_neg_avail,
                                  jnp.floor(negative_ratio * n_pos)),
                      jnp.minimum(n_neg_avail, 100.0))
    k = n_neg.astype(jnp.int32)

    vals = jnp.maximum(negce.reshape(-1), 0.0)   # sentinels/pads -> 0 (CE >= 0)
    kth = _kth_largest(vals, k)                  # exact k-th largest value
    above = vals > kth
    sum_above = jnp.sum(jnp.where(above, vals, 0.0))
    cnt_above = jnp.sum(above).astype(f32)
    # exact top-k sum = everything strictly above the k-th value plus the
    # remaining (tied) slots taken at exactly that value.
    top_neg_sum = jnp.where(k > 0,
                            sum_above + (n_neg - cnt_above) * kth, 0.0)

    loss_pos = jnp.where(has_pos, pos_ce_sum, 0.0)
    loss_tr = (loss_pos + top_neg_sum) / jnp.maximum(n_pos + n_neg, 1.0)

    # ---- TCL classification (mean over tr_train_mask, count == n_pos) -------
    loss_tcl = jnp.where(has_pos, tcl_ce_sum / jnp.maximum(n_pos, 1.0), 0.0)

    # ---- geometry regressions: sums over tcl_mask, mean over |tcl_mask|,
    #      gated on tcl_train_mask (matches the reference exactly) ------------
    has_geo = n_tcl_train > 0.0
    denom = jnp.maximum(n_tcl, 1.0)
    loss_radii = jnp.where(has_geo, radii_sl1_sum / denom, 0.0)
    loss_sin = jnp.where(has_geo, sin_sl1_sum / denom, 0.0)
    loss_cos = jnp.where(has_geo, cos_sl1_sum / denom, 0.0)

    return loss_tr, loss_tcl, loss_radii, loss_sin, loss_cos


if __name__ == "__main__":
    key = jax.random.PRNGKey(0)
    ks = jax.random.split(key, 6)
    B, H, W = 2, 16, 16

    inp = jax.random.normal(ks[0], (B, 7, H, W), jnp.float32)
    tr_mask = (jax.random.uniform(ks[1], (B, H, W)) > 0.5).astype(jnp.float32)
    tcl_mask = ((jax.random.uniform(ks[2], (B, H, W)) > 0.6).astype(jnp.float32)
                * tr_mask)
    train_mask = (jax.random.uniform(ks[3], (B, H, W)) > 0.2).astype(jnp.float32)
    theta = jax.random.uniform(ks[4], (B, H, W), minval=0.0, maxval=2 * jnp.pi)
    sin_map = jnp.sin(theta)
    cos_map = jnp.cos(theta)
    radii_map = jax.random.uniform(ks[5], (B, H, W), minval=1.0, maxval=5.0)

    losses = text_loss(inp, tr_mask, tcl_mask, sin_map, cos_map,
                       radii_map, train_mask)
    losses = jax.block_until_ready(losses)
    print("KERNEL_OK")
</pallas_src>

<mosaic_0001>
module attributes {stable_mosaic.version = 11 : i64} {
  func.func @_textloss_kernel(%arg0: i32, %arg1: i32, %arg2: i32, %arg3: memref<1x7x32x128xf32, #tpu.memory_space<vmem>>, %arg4: memref<1x32x128xi8, #tpu.memory_space<vmem>>, %arg5: memref<1x32x128xi8, #tpu.memory_space<vmem>>, %arg6: memref<1x32x128xi8, #tpu.memory_space<vmem>>, %arg7: memref<1x32x128xf32, #tpu.memory_space<vmem>>, %arg8: memref<1x32x128xf32, #tpu.memory_space<vmem>>, %arg9: memref<1x32x128xf32, #tpu.memory_space<vmem>>, %arg10: memref<1x32x128xf32, #tpu.memory_space<vmem>>, %arg11: memref<1x9x8x128xf32, #tpu.memory_space<vmem>>) attributes {dimension_semantics = [#tpu.dimension_semantics<parallel>, #tpu.dimension_semantics<parallel>, #tpu.dimension_semantics<arbitrary>], iteration_bounds = array<i64: 1, 2, 1>, scalar_prefetch = 0 : i64, scratch_operands = 0 : i64, tpu.core_type = #tpu.core_type<tc>, window_params = [{transform_indices = @transform_0, window_bounds = array<i64: 1, 7, 32, 128>}, {transform_indices = @transform_1, window_bounds = array<i64: 1, 32, 128>}, {transform_indices = @transform_2, window_bounds = array<i64: 1, 32, 128>}, {transform_indices = @transform_3, window_bounds = array<i64: 1, 32, 128>}, {transform_indices = @transform_4, window_bounds = array<i64: 1, 32, 128>}, {transform_indices = @transform_5, window_bounds = array<i64: 1, 32, 128>}, {transform_indices = @transform_6, window_bounds = array<i64: 1, 32, 128>}, {transform_indices = @transform_7, window_bounds = array<i64: 1, 32, 128>}, {transform_indices = @transform_8, window_bounds = array<i64: 1, 9, 8, 128>}]} {
    %c0_i32 = arith.constant 0 : i32
    %0 = arith.cmpi eq, %arg2, %c0_i32 : i32
    %1 = arith.extui %0 : i1 to i32
    %c0_i32_0 = arith.constant 0 : i32
    %2 = arith.cmpi ne, %1, %c0_i32_0 : i32
    scf.if %2 {
      %cst_136 = arith.constant 0.000000e+00 : f32
      %224 = vector.broadcast %cst_136 : f32 to vector<1x9x8x128xf32>
      %c0_137 = arith.constant 0 : index
      %c0_138 = arith.constant 0 : index
      %c0_139 = arith.constant 0 : index
      %c0_140 = arith.constant 0 : index
      %225 = vector.load %arg11[%c0_137, %c0_138, %c0_139, %c0_140] : memref<1x9x8x128xf32, #tpu.memory_space<vmem>>, vector<1x9x8x128xf32>
      tpu.vector_store %arg11[%c0_137, %c0_138, %c0_139, %c0_140], %224 {strides = array<i32>} : memref<1x9x8x128xf32, #tpu.memory_space<vmem>>, vector<1x9x8x128xf32>,
    } else {
    }
    %cst = arith.constant 0.000000e+00 : f32
    %3 = vector.broadcast %cst : f32 to vector<8x128xf32>
    %c0_i32_1 = arith.constant 0 : i32
    %c32_i32 = arith.constant 32 : i32
    %4 = arith.muli %c0_i32_1, %c32_i32 : i32
    %5 = tpu.assume_multiple %4, 32 : i32
    %c0 = arith.constant 0 : index
    %c0_2 = arith.constant 0 : index
    %6 = arith.index_cast %5 : i32 to index
    %c0_3 = arith.constant 0 : index
    %7 = vector.load %arg3[%c0, %c0_2, %6, %c0_3] : memref<1x7x32x128xf32, #tpu.memory_space<vmem>>, vector<1x1x32x128xf32>
    %8 = vector.shape_cast %7 : vector<1x1x32x128xf32> to vector<32x128xf32>
    %c0_4 = arith.constant 0 : index
    %c1 = arith.constant 1 : index
    %9 = arith.index_cast %5 : i32 to index
    %c0_5 = arith.constant 0 : index
    %10 = vector.load %arg3[%c0_4, %c1, %9, %c0_5] : memref<1x7x32x128xf32, #tpu.memory_space<vmem>>, vector<1x1x32x128xf32>
    %11 = vector.shape_cast %10 : vector<1x1x32x128xf32> to vector<32x128xf32>
    %c0_6 = arith.constant 0 : index
    %c2 = arith.constant 2 : index
    %12 = arith.index_cast %5 : i32 to index
    %c0_7 = arith.constant 0 : index
    %13 = vector.load %arg3[%c0_6, %c2, %12, %c0_7] : memref<1x7x32x128xf32, #tpu.memory_space<vmem>>, vector<1x1x32x128xf32>
    %14 = vector.shape_cast %13 : vector<1x1x32x128xf32> to vector<32x128xf32>
    %c0_8 = arith.constant 0 : index
    %c3 = arith.constant 3 : index
    %15 = arith.index_cast %5 : i32 to index
    %c0_9 = arith.constant 0 : index
    %16 = vector.load %arg3[%c0_8, %c3, %15, %c0_9] : memref<1x7x32x128xf32, #tpu.memory_space<vmem>>, vector<1x1x32x128xf32>
    %17 = vector.shape_cast %16 : vector<1x1x32x128xf32> to vector<32x128xf32>
    %c0_10 = arith.constant 0 : index
    %c4 = arith.constant 4 : index
    %18 = arith.index_cast %5 : i32 to index
    %c0_11 = arith.constant 0 : index
    %19 = vector.load %arg3[%c0_10, %c4, %18, %c0_11] : memref<1x7x32x128xf32, #tpu.memory_space<vmem>>, vector<1x1x32x128xf32>
    %20 = vector.shape_cast %19 : vector<1x1x32x128xf32> to vector<32x128xf32>
    %c0_12 = arith.constant 0 : index
    %c5 = arith.constant 5 : index
    %21 = arith.index_cast %5 : i32 to index
    %c0_13 = arith.constant 0 : index
    %22 = vector.load %arg3[%c0_12, %c5, %21, %c0_13] : memref<1x7x32x128xf32, #tpu.memory_space<vmem>>, vector<1x1x32x128xf32>
    %23 = vector.shape_cast %22 : vector<1x1x32x128xf32> to vector<32x128xf32>
    %c0_14 = arith.constant 0 : index
    %c6 = arith.constant 6 : index
    %24 = arith.index_cast %5 : i32 to index
    %c0_15 = arith.constant 0 : index
    %25 = vector.load %arg3[%c0_14, %c6, %24, %c0_15] : memref<1x7x32x128xf32, #tpu.memory_space<vmem>>, vector<1x1x32x128xf32>
    %26 = vector.shape_cast %25 : vector<1x1x32x128xf32> to vector<32x128xf32>
    %c0_16 = arith.constant 0 : index
    %27 = arith.index_cast %5 : i32 to index
    %c0_17 = arith.constant 0 : index
    %28 = vector.load %arg4[%c0_16, %27, %c0_17] : memref<1x32x128xi8, #tpu.memory_space<vmem>>, vector<1x32x128xi8>
    %29 = vector.shape_cast %28 : vector<1x32x128xi8> to vector<32x128xi8>
    %30 = arith.sitofp %29 : vector<32x128xi8> to vector<32x128xf32>
    %c0_18 = arith.constant 0 : index
    %31 = arith.index_cast %5 : i32 to index
    %c0_19 = arith.constant 0 : index
    %32 = vector.load %arg5[%c0_18, %31, %c0_19] : memref<1x32x128xi8, #tpu.memory_space<vmem>>, vector<1x32x128xi8>
    %33 = vector.shape_cast %32 : vector<1x32x128xi8> to vector<32x128xi8>
    %34 = arith.sitofp %33 : vector<32x128xi8> to vector<32x128xf32>
    %c0_20 = arith.constant 0 : index
    %35 = arith.index_cast %5 : i32 to index
    %c0_21 = arith.constant 0 : index
    %36 = vector.load %arg6[%c0_20, %35, %c0_21] : memref<1x32x128xi8, #tpu.memory_space<vmem>>, vector<1x32x128xi8>
    %37 = vector.shape_cast %36 : vector<1x32x128xi8> to vector<32x128xi8>
    %38 = arith.sitofp %37 : vector<32x128xi8> to vector<32x128xf32>
    %c0_22 = arith.constant 0 : index
    %39 = arith.index_cast %5 : i32 to index
    %c0_23 = arith.constant 0 : index
    %40 = vector.load %arg7[%c0_22, %39, %c0_23] : memref<1x32x128xf32, #tpu.memory_space<vmem>>, vector<1x32x128xf32>
    %41 = vector.shape_cast %40 : vector<1x32x128xf32> to vector<32x128xf32>
    %c0_24 = arith.constant 0 : index
    %42 = arith.index_cast %5 : i32 to index
    %c0_25 = arith.constant 0 : index
    %43 = vector.load %arg8[%c0_24, %42, %c0_25] : memref<1x32x128xf32, #tpu.memory_space<vmem>>, vector<1x32x128xf32>
    %44 = vector.shape_cast %43 : vector<1x32x128xf32> to vector<32x128xf32>
    %c0_26 = arith.constant 0 : index
    %45 = arith.index_cast %5 : i32 to index
    %c0_27 = arith.constant 0 : index
    %46 = vector.load %arg9[%c0_26, %45, %c0_27] : memref<1x32x128xf32, #tpu.memory_space<vmem>>, vector<1x32x128xf32>
    %47 = vector.shape_cast %46 : vector<1x32x128xf32> to vector<32x128xf32>
    %48 = arith.subf %8, %11 : vector<32x128xf32>
    %cst_28 = arith.constant 5.000000e-01 : f32
    %49 = vector.broadcast %cst_28 : f32 to vector<32x128xf32>
    %50 = arith.cmpf ogt, %30, %49 : vector<32x128xf32>
    %cst_29 = arith.constant 0.000000e+00 : f32
    %51 = vector.broadcast %cst_29 : f32 to vector<32x128xf32>
    %52 = arith.subf %51, %48 : vector<32x128xf32>
    %53 = arith.select %50, %48, %52 : vector<32x128xi1>, vector<32x128xf32>
    %cst_30 = arith.constant 0.000000e+00 : f32
    %54 = vector.broadcast %cst_30 : f32 to vector<32x128xf32>
    %55 = arith.maximumf %53, %54 : vector<32x128xf32>
    %56 = math.absf %53 : vector<32x128xf32>
    %cst_31 = arith.constant 0.000000e+00 : f32
    %57 = vector.broadcast %cst_31 : f32 to vector<32x128xf32>
    %58 = arith.subf %57, %56 : vector<32x128xf32>
    %59 = math.exp %58 : vector<32x128xf32>
    %cst_32 = arith.constant 1.000000e+00 : f32
    %60 = vector.broadcast %cst_32 : f32 to vector<32x128xf32>
    %61 = arith.addf %60, %59 : vector<32x128xf32>
    %62 = math.log %61 : vector<32x128xf32>
    %63 = arith.addf %55, %62 : vector<32x128xf32>
    %64 = arith.subf %14, %17 : vector<32x128xf32>
    %cst_33 = arith.constant 5.000000e-01 : f32
    %65 = vector.broadcast %cst_33 : f32 to vector<32x128xf32>
    %66 = arith.cmpf ogt, %34, %65 : vector<32x128xf32>
    %cst_34 = arith.constant 0.000000e+00 : f32
    %67 = vector.broadcast %cst_34 : f32 to vector<32x128xf32>
    %68 = arith.subf %67, %64 : vector<32x128xf32>
    %69 = arith.select %66, %64, %68 : vector<32x128xi1>, vector<32x128xf32>
    %cst_35 = arith.constant 0.000000e+00 : f32
    %70 = vector.broadcast %cst_35 : f32 to vector<32x128xf32>
    %71 = arith.maximumf %69, %70 : vector<32x128xf32>
    %72 = math.absf %69 : vector<32x128xf32>
    %cst_36 = arith.constant 0.000000e+00 : f32
    %73 = vector.broadcast %cst_36 : f32 to vector<32x128xf32>
    %74 = arith.subf %73, %72 : vector<32x128xf32>
    %75 = math.exp %74 : vector<32x128xf32>
    %cst_37 = arith.constant 1.000000e+00 : f32
    %76 = vector.broadcast %cst_37 : f32 to vector<32x128xf32>
    %77 = arith.addf %76, %75 : vector<32x128xf32>
    %78 = math.log %77 : vector<32x128xf32>
    %79 = arith.addf %71, %78 : vector<32x128xf32>
    %80 = arith.mulf %30, %38 : vector<32x128xf32>
    %cst_38 = arith.constant 1.000000e+00 : f32
    %81 = vector.broadcast %cst_38 : f32 to vector<32x128xf32>
    %82 = arith.subf %81, %30 : vector<32x128xf32>
    %83 = arith.mulf %82, %38 : vector<32x128xf32>
    %cst_39 = arith.constant 5.000000e-01 : f32
    %84 = vector.broadcast %cst_39 : f32 to vector<32x128xf32>
    %85 = arith.cmpf ogt, %83, %84 : vector<32x128xf32>
    %cst_40 = arith.constant -1.000000e+00 : f32
    %86 = vector.broadcast %cst_40 : f32 to vector<32x128xf32>
    %87 = arith.select %85, %63, %86 : vector<32x128xi1>, vector<32x128xf32>
    %c0_41 = arith.constant 0 : index
    %88 = arith.index_cast %5 : i32 to index
    %c0_42 = arith.constant 0 : index
    %89 = vector.load %arg10[%c0_41, %88, %c0_42] : memref<1x32x128xf32, #tpu.memory_space<vmem>>, vector<1x32x128xf32>
    %90 = vector.shape_cast %89 : vector<1x32x128xf32> to vector<32x128xf32>
    %91 = vector.shape_cast %87 : vector<32x128xf32> to vector<1x32x128xf32>
    tpu.vector_store %arg10[%c0_41, %88, %c0_42], %91 {strides = array<i32>} : memref<1x32x128xf32, #tpu.memory_space<vmem>>, vector<1x32x128xf32>,
    %92 = arith.mulf %20, %20 : vector<32x128xf32>
    %93 = arith.mulf %23, %23 : vector<32x128xf32>
    %94 = arith.addf %92, %93 : vector<32x128xf32>
    %95 = math.rsqrt %94 : vector<32x128xf32>
    %96 = arith.mulf %20, %95 : vector<32x128xf32>
    %97 = arith.mulf %23, %95 : vector<32x128xf32>
    %cst_43 = arith.constant 5.000000e-01 : f32
    %98 = vector.broadcast %cst_43 : f32 to vector<32x128xf32>
    %99 = arith.cmpf ogt, %34, %98 : vector<32x128xf32>
    %cst_44 = arith.constant 1.000000e+00 : f32
    %100 = vector.broadcast %cst_44 : f32 to vector<32x128xf32>
    %101 = arith.select %99, %47, %100 : vector<32x128xi1>, vector<32x128xf32>
    %102 = tpu.reciprocal %101 {approx = true} : vector<32x128xf32> -> vector<32x128xf32>
    %103 = arith.mulf %26, %102 : vector<32x128xf32>
    %104 = arith.mulf %80, %63 : vector<32x128xf32>
    %105 = arith.mulf %80, %79 : vector<32x128xf32>
    %cst_45 = arith.constant 1.000000e+00 : f32
    %106 = vector.broadcast %cst_45 : f32 to vector<32x128xf32>
    %107 = arith.subf %103, %106 : vector<32x128xf32>
    %108 = math.absf %107 : vector<32x128xf32>
    %cst_46 = arith.constant 1.000000e+00 : f32
    %109 = vector.broadcast %cst_46 : f32 to vector<32x128xf32>
    %110 = arith.cmpf olt, %108, %109 : vector<32x128xf32>
    %cst_47 = arith.constant 5.000000e-01 : f32
    %111 = vector.broadcast %cst_47 : f32 to vector<32x128xf32>
    %112 = arith.mulf %111, %108 : vector<32x128xf32>
    %113 = arith.mulf %112, %108 : vector<32x128xf32>
    %cst_48 = arith.constant 5.000000e-01 : f32
    %114 = vector.broadcast %cst_48 : f32 to vector<32x128xf32>
    %115 = arith.subf %108, %114 : vector<32x128xf32>
    %116 = arith.select %110, %113, %115 : vector<32x128xi1>, vector<32x128xf32>
    %117 = arith.mulf %34, %116 : vector<32x128xf32>
    %118 = arith.subf %96, %41 : vector<32x128xf32>
    %119 = math.absf %118 : vector<32x128xf32>
    %cst_49 = arith.constant 1.000000e+00 : f32
    %120 = vector.broadcast %cst_49 : f32 to vector<32x128xf32>
    %121 = arith.cmpf olt, %119, %120 : vector<32x128xf32>
    %cst_50 = arith.constant 5.000000e-01 : f32
    %122 = vector.broadcast %cst_50 : f32 to vector<32x128xf32>
    %123 = arith.mulf %122, %119 : vector<32x128xf32>
    %124 = arith.mulf %123, %119 : vector<32x128xf32>
    %cst_51 = arith.constant 5.000000e-01 : f32
    %125 = vector.broadcast %cst_51 : f32 to vector<32x128xf32>
    %126 = arith.subf %119, %125 : vector<32x128xf32>
    %127 = arith.select %121, %124, %126 : vector<32x128xi1>, vector<32x128xf32>
    %cst_52 = arith.constant 0.000000e+00 : f32
    %128 = vector.broadcast %cst_52 : f32 to vector<32x128xf32>
    %129 = arith.select %99, %127, %128 : vector<32x128xi1>, vector<32x128xf32>
    %130 = arith.subf %97, %44 : vector<32x128xf32>
    %131 = math.absf %130 : vector<32x128xf32>
    %cst_53 = arith.constant 1.000000e+00 : f32
    %132 = vector.broadcast %cst_53 : f32 to vector<32x128xf32>
    %133 = arith.cmpf olt, %131, %132 : vector<32x128xf32>
    %cst_54 = arith.constant 5.000000e-01 : f32
    %134 = vector.broadcast %cst_54 : f32 to vector<32x128xf32>
    %135 = arith.mulf %134, %131 : vector<32x128xf32>
    %136 = arith.mulf %135, %131 : vector<32x128xf32>
    %cst_55 = arith.constant 5.000000e-01 : f32
    %137 = vector.broadcast %cst_55 : f32 to vector<32x128xf32>
    %138 = arith.subf %131, %137 : vector<32x128xf32>
    %139 = arith.select %133, %136, %138 : vector<32x128xi1>, vector<32x128xf32>
    %cst_56 = arith.constant 0.000000e+00 : f32
    %140 = vector.broadcast %cst_56 : f32 to vector<32x128xf32>
    %141 = arith.select %99, %139, %140 : vector<32x128xi1>, vector<32x128xf32>
    %142 = arith.mulf %38, %34 : vector<32x128xf32>
    %143 = vector.shape_cast %80 : vector<32x128xf32> to vector<4x8x128xf32>
    %cst_57 = arith.constant dense<0.000000e+00> : vector<8x128xf32>
    %144 = vector.multi_reduction <add>, %143, %cst_57 [0] : vector<4x8x128xf32> to vector<8x128xf32>
    %145 = arith.addf %3, %144 : vector<8x128xf32>
    %146 = vector.shape_cast %104 : vector<32x128xf32> to vector<4x8x128xf32>
    %cst_58 = arith.constant dense<0.000000e+00> : vector<8x128xf32>
    %147 = vector.multi_reduction <add>, %146, %cst_58 [0] : vector<4x8x128xf32> to vector<8x128xf32>
    %148 = arith.addf %3, %147 : vector<8x128xf32>
    %149 = vector.shape_cast %38 : vector<32x128xf32> to vector<4x8x128xf32>
    %cst_59 = arith.constant dense<0.000000e+00> : vector<8x128xf32>
    %150 = vector.multi_reduction <add>, %149, %cst_59 [0] : vector<4x8x128xf32> to vector<8x128xf32>
    %151 = arith.addf %3, %150 : vector<8x128xf32>
    %152 = vector.shape_cast %105 : vector<32x128xf32> to vector<4x8x128xf32>
    %cst_60 = arith.constant dense<0.000000e+00> : vector<8x128xf32>
    %153 = vector.multi_reduction <add>, %152, %cst_60 [0] : vector<4x8x128xf32> to vector<8x128xf32>
    %154 = arith.addf %3, %153 : vector<8x128xf32>
    %155 = vector.shape_cast %34 : vector<32x128xf32> to vector<4x8x128xf32>
    %cst_61 = arith.constant dense<0.000000e+00> : vector<8x128xf32>
    %156 = vector.multi_reduction <add>, %155, %cst_61 [0] : vector<4x8x128xf32> to vector<8x128xf32>
    %157 = arith.addf %3, %156 : vector<8x128xf32>
    %158 = vector.shape_cast %117 : vector<32x128xf32> to vector<4x8x128xf32>
    %cst_62 = arith.constant dense<0.000000e+00> : vector<8x128xf32>
    %159 = vector.multi_reduction <add>, %158, %cst_62 [0] : vector<4x8x128xf32> to vector<8x128xf32>
    %160 = arith.addf %3, %159 : vector<8x128xf32>
    %161 = vector.shape_cast %129 : vector<32x128xf32> to vector<4x8x128xf32>
    %cst_63 = arith.constant dense<0.000000e+00> : vector<8x128xf32>
    %162 = vector.multi_reduction <add>, %161, %cst_63 [0] : vector<4x8x128xf32> to vector<8x128xf32>
    %163 = arith.addf %3, %162 : vector<8x128xf32>
    %164 = vector.shape_cast %141 : vector<32x128xf32> to vector<4x8x128xf32>
    %cst_64 = arith.constant dense<0.000000e+00> : vector<8x128xf32>
    %165 = vector.multi_reduction <add>, %164, %cst_64 [0] : vector<4x8x128xf32> to vector<8x128xf32>
    %166 = arith.addf %3, %165 : vector<8x128xf32>
    %167 = vector.shape_cast %142 : vector<32x128xf32> to vector<4x8x128xf32>
    %cst_65 = arith.constant dense<0.000000e+00> : vector<8x128xf32>
    %168 = vector.multi_reduction <add>, %167, %cst_65 [0] : vector<4x8x128xf32> to vector<8x128xf32>
    %169 = arith.addf %3, %168 : vector<8x128xf32>
    %c1_i32 = arith.constant 1 : i32
    %c0_66 = arith.constant 0 : index
    %c0_67 = arith.constant 0 : index
    %c0_68 = arith.constant 0 : index
    %c0_69 = arith.constant 0 : index
    %170 = vector.load %arg11[%c0_66, %c0_67, %c0_68, %c0_69] : memref<1x9x8x128xf32, #tpu.memory_space<vmem>>, vector<1x1x8x128xf32>
    %171 = vector.shape_cast %170 : vector<1x1x8x128xf32> to vector<8x128xf32>
    %172 = arith.addf %171, %145 : vector<8x128xf32>
    %c0_70 = arith.constant 0 : index
    %c0_71 = arith.constant 0 : index
    %c0_72 = arith.constant 0 : index
    %c0_73 = arith.constant 0 : index
    %173 = vector.load %arg11[%c0_70, %c0_71, %c0_72, %c0_73] : memref<1x9x8x128xf32, #tpu.memory_space<vmem>>, vector<1x1x8x128xf32>
    %174 = vector.shape_cast %173 : vector<1x1x8x128xf32> to vector<8x128xf32>
    %175 = vector.shape_cast %172 : vector<8x128xf32> to vector<1x1x8x128xf32>
    tpu.vector_store %arg11[%c0_70, %c0_71, %c0_72, %c0_73], %175 {strides = array<i32>} : memref<1x9x8x128xf32, #tpu.memory_space<vmem>>, vector<1x1x8x128xf32>,
    %c0_74 = arith.constant 0 : index
    %c1_75 = arith.constant 1 : index
    %c0_76 = arith.constant 0 : index
    %c0_77 = arith.constant 0 : index
    %176 = vector.load %arg11[%c0_74, %c1_75, %c0_76, %c0_77] : memref<1x9x8x128xf32, #tpu.memory_space<vmem>>, vector<1x1x8x128xf32>
    %177 = vector.shape_cast %176 : vector<1x1x8x128xf32> to vector<8x128xf32>
    %178 = arith.addf %177, %148 : vector<8x128xf32>
    %c0_78 = arith.constant 0 : index
    %c1_79 = arith.constant 1 : index
    %c0_80 = arith.constant 0 : index
    %c0_81 = arith.constant 0 : index
    %179 = vector.load %arg11[%c0_78, %c1_79, %c0_80, %c0_81] : memref<1x9x8x128xf32, #tpu.memory_space<vmem>>, vector<1x1x8x128xf32>
    %180 = vector.shape_cast %179 : vector<1x1x8x128xf32> to vector<8x128xf32>
    %181 = vector.shape_cast %178 : vector<8x128xf32> to vector<1x1x8x128xf32>
    tpu.vector_store %arg11[%c0_78, %c1_79, %c0_80, %c0_81], %181 {strides = array<i32>} : memref<1x9x8x128xf32, #tpu.memory_space<vmem>>, vector<1x1x8x128xf32>,
    %c0_82 = arith.constant 0 : index
    %c2_83 = arith.constant 2 : index
    %c0_84 = arith.constant 0 : index
    %c0_85 = arith.constant 0 : index
    %182 = vector.load %arg11[%c0_82, %c2_83, %c0_84, %c0_85] : memref<1x9x8x128xf32, #tpu.memory_space<vmem>>, vector<1x1x8x128xf32>
    %183 = vector.shape_cast %182 : vector<1x1x8x128xf32> to vector<8x128xf32>
    %184 = arith.addf %183, %151 : vector<8x128xf32>
    %c0_86 = arith.constant 0 : index
    %c2_87 = arith.constant 2 : index
    %c0_88 = arith.constant 0 : index
    %c0_89 = arith.constant 0 : index
    %185 = vector.load %arg11[%c0_86, %c2_87, %c0_88, %c0_89] : memref<1x9x8x128xf32, #tpu.memory_space<vmem>>, vector<1x1x8x128xf32>
    %186 = vector.shape_cast %185 : vector<1x1x8x128xf32> to vector<8x128xf32>
    %187 = vector.shape_cast %184 : vector<8x128xf32> to vector<1x1x8x128xf32>
    tpu.vector_store %arg11[%c0_86, %c2_87, %c0_88, %c0_89], %187 {strides = array<i32>} : memref<1x9x8x128xf32, #tpu.memory_space<vmem>>, vector<1x1x8x128xf32>,
    %c0_90 = arith.constant 0 : index
    %c3_91 = arith.constant 3 : index
    %c0_92 = arith.constant 0 : index
    %c0_93 = arith.constant 0 : index
    %188 = vector.load %arg11[%c0_90, %c3_91, %c0_92, %c0_93] : memref<1x9x8x128xf32, #tpu.memory_space<vmem>>, vector<1x1x8x128xf32>
    %189 = vector.shape_cast %188 : vector<1x1x8x128xf32> to vector<8x128xf32>
    %190 = arith.addf %189, %154 : vector<8x128xf32>
    %c0_94 = arith.constant 0 : index
    %c3_95 = arith.constant 3 : index
    %c0_96 = arith.constant 0 : index
    %c0_97 = arith.constant 0 : index
    %191 = vector.load %arg11[%c0_94, %c3_95, %c0_96, %c0_97] : memref<1x9x8x128xf32, #tpu.memory_space<vmem>>, vector<1x1x8x128xf32>
    %192 = vector.shape_cast %191 : vector<1x1x8x128xf32> to vector<8x128xf32>
    %193 = vector.shape_cast %190 : vector<8x128xf32> to vector<1x1x8x128xf32>
    tpu.vector_store %arg11[%c0_94, %c3_95, %c0_96, %c0_97], %193 {strides = array<i32>} : memref<1x9x8x128xf32, #tpu.memory_space<vmem>>, vector<1x1x8x128xf32>,
    %c0_98 = arith.constant 0 : index
    %c4_99 = arith.constant 4 : index
    %c0_100 = arith.constant 0 : index
    %c0_101 = arith.constant 0 : index
    %194 = vector.load %arg11[%c0_98, %c4_99, %c0_100, %c0_101] : memref<1x9x8x128xf32, #tpu.memory_space<vmem>>, vector<1x1x8x128xf32>
    %195 = vector.shape_cast %194 : vector<1x1x8x128xf32> to vector<8x128xf32>
    %196 = arith.addf %195, %157 : vector<8x128xf32>
    %c0_102 = arith.constant 0 : index
    %c4_103 = arith.constant 4 : index
    %c0_104 = arith.constant 0 : index
    %c0_105 = arith.constant 0 : index
    %197 = vector.load %arg11[%c0_102, %c4_103, %c0_104, %c0_105] : memref<1x9x8x128xf32, #tpu.memory_space<vmem>>, vector<1x1x8x128xf32>
    %198 = vector.shape_cast %197 : vector<1x1x8x128xf32> to vector<8x128xf32>
    %199 = vector.shape_cast %196 : vector<8x128xf32> to vector<1x1x8x128xf32>
    tpu.vector_store %arg11[%c0_102, %c4_103, %c0_104, %c0_105], %199 {strides = array<i32>} : memref<1x9x8x128xf32, #tpu.memory_space<vmem>>, vector<1x1x8x128xf32>,
    %c0_106 = arith.constant 0 : index
    %c5_107 = arith.constant 5 : index
    %c0_108 = arith.constant 0 : index
    %c0_109 = arith.constant 0 : index
    %200 = vector.load %arg11[%c0_106, %c5_107, %c0_108, %c0_109] : memref<1x9x8x128xf32, #tpu.memory_space<vmem>>, vector<1x1x8x128xf32>
    %201 = vector.shape_cast %200 : vector<1x1x8x128xf32> to vector<8x128xf32>
    %202 = arith.addf %201, %160 : vector<8x128xf32>
    %c0_110 = arith.constant 0 : index
    %c5_111 = arith.constant 5 : index
    %c0_112 = arith.constant 0 : index
    %c0_113 = arith.constant 0 : index
    %203 = vector.load %arg11[%c0_110, %c5_111, %c0_112, %c0_113] : memref<1x9x8x128xf32, #tpu.memory_space<vmem>>, vector<1x1x8x128xf32>
    %204 = vector.shape_cast %203 : vector<1x1x8x128xf32> to vector<8x128xf32>
    %205 = vector.shape_cast %202 : vector<8x128xf32> to vector<1x1x8x128xf32>
    tpu.vector_store %arg11[%c0_110, %c5_111, %c0_112, %c0_113], %205 {strides = array<i32>} : memref<1x9x8x128xf32, #tpu.memory_space<vmem>>, vector<1x1x8x128xf32>,
    %c0_114 = arith.constant 0 : index
    %c6_115 = arith.constant 6 : index
    %c0_116 = arith.constant 0 : index
    %c0_117 = arith.constant 0 : index
    %206 = vector.load %arg11[%c0_114, %c6_115, %c0_116, %c0_117] : memref<1x9x8x128xf32, #tpu.memory_space<vmem>>, vector<1x1x8x128xf32>
    %207 = vector.shape_cast %206 : vector<1x1x8x128xf32> to vector<8x128xf32>
    %208 = arith.addf %207, %163 : vector<8x128xf32>
    %c0_118 = arith.constant 0 : index
    %c6_119 = arith.constant 6 : index
    %c0_120 = arith.constant 0 : index
    %c0_121 = arith.constant 0 : index
    %209 = vector.load %arg11[%c0_118, %c6_119, %c0_120, %c0_121] : memref<1x9x8x128xf32, #tpu.memory_space<vmem>>, vector<1x1x8x128xf32>
    %210 = vector.shape_cast %209 : vector<1x1x8x128xf32> to vector<8x128xf32>
    %211 = vector.shape_cast %208 : vector<8x128xf32> to vector<1x1x8x128xf32>
    tpu.vector_store %arg11[%c0_118, %c6_119, %c0_120, %c0_121], %211 {strides = array<i32>} : memref<1x9x8x128xf32, #tpu.memory_space<vmem>>, vector<1x1x8x128xf32>,
    %c0_122 = arith.constant 0 : index
    %c7 = arith.constant 7 : index
    %c0_123 = arith.constant 0 : index
    %c0_124 = arith.constant 0 : index
    %212 = vector.load %arg11[%c0_122, %c7, %c0_123, %c0_124] : memref<1x9x8x128xf32, #tpu.memory_space<vmem>>, vector<1x1x8x128xf32>
    %213 = vector.shape_cast %212 : vector<1x1x8x128xf32> to vector<8x128xf32>
    %214 = arith.addf %213, %166 : vector<8x128xf32>
    %c0_125 = arith.constant 0 : index
    %c7_126 = arith.constant 7 : index
    %c0_127 = arith.constant 0 : index
    %c0_128 = arith.constant 0 : index
    %215 = vector.load %arg11[%c0_125, %c7_126, %c0_127, %c0_128] : memref<1x9x8x128xf32, #tpu.memory_space<vmem>>, vector<1x1x8x128xf32>
    %216 = vector.shape_cast %215 : vector<1x1x8x128xf32> to vector<8x128xf32>
    %217 = vector.shape_cast %214 : vector<8x128xf32> to vector<1x1x8x128xf32>
    tpu.vector_store %arg11[%c0_125, %c7_126, %c0_127, %c0_128], %217 {strides = array<i32>} : memref<1x9x8x128xf32, #tpu.memory_space<vmem>>, vector<1x1x8x128xf32>,
    %c0_129 = arith.constant 0 : index
    %c8 = arith.constant 8 : index
    %c0_130 = arith.constant 0 : index
    %c0_131 = arith.constant 0 : index
    %218 = vector.load %arg11[%c0_129, %c8, %c0_130, %c0_131] : memref<1x9x8x128xf32, #tpu.memory_space<vmem>>, vector<1x1x8x128xf32>
    %219 = vector.shape_cast %218 : vector<1x1x8x128xf32> to vector<8x128xf32>
    %220 = arith.addf %219, %169 : vector<8x128xf32>
    %c0_132 = arith.constant 0 : index
    %c8_133 = arith.constant 8 : index
    %c0_134 = arith.constant 0 : index
    %c0_135 = arith.constant 0 : index
    %221 = vector.load %arg11[%c0_132, %c8_133, %c0_134, %c0_135] : memref<1x9x8x128xf32, #tpu.memory_space<vmem>>, vector<1x1x8x128xf32>
    %222 = vector.shape_cast %221 : vector<1x1x8x128xf32> to vector<8x128xf32>
    %223 = vector.shape_cast %220 : vector<8x128xf32> to vector<1x1x8x128xf32>
    tpu.vector_store %arg11[%c0_132, %c8_133, %c0_134, %c0_135], %223 {strides = array<i32>} : memref<1x9x8x128xf32, #tpu.memory_space<vmem>>, vector<1x1x8x128xf32>,
    return
  }
  func.func @transform_0(%arg0: i32, %arg1: i32, %arg2: i32) -> (i32, i32, i32, i32) {
    %c1_i32 = arith.constant 1 : i32
    %0 = arith.muli %arg0, %c1_i32 : i32
    %1 = arith.addi %0, %arg2 : i32
    %c0_i32 = arith.constant 0 : i32
    %c0_i32_0 = arith.constant 0 : i32
    %c0_i32_1 = arith.constant 0 : i32
    return %arg1, %c0_i32, %1, %c0_i32_0 : i32, i32, i32, i32
  }
  func.func @transform_1(%arg0: i32, %arg1: i32, %arg2: i32) -> (i32, i32, i32) {
    %c1_i32 = arith.constant 1 : i32
    %0 = arith.muli %arg0, %c1_i32 : i32
    %1 = arith.addi %0, %arg2 : i32
    %c0_i32 = arith.constant 0 : i32
    %c0_i32_0 = arith.constant 0 : i32
    return %arg1, %1, %c0_i32 : i32, i32, i32
  }
  func.func @transform_2(%arg0: i32, %arg1: i32, %arg2: i32) -> (i32, i32, i32) {
    %c1_i32 = arith.constant 1 : i32
    %0 = arith.muli %arg0, %c1_i32 : i32
    %1 = arith.addi %0, %arg2 : i32
    %c0_i32 = arith.constant 0 : i32
    %c0_i32_0 = arith.constant 0 : i32
    return %arg1, %1, %c0_i32 : i32, i32, i32
  }
  func.func @transform_3(%arg0: i32, %arg1: i32, %arg2: i32) -> (i32, i32, i32) {
    %c1_i32 = arith.constant 1 : i32
    %0 = arith.muli %arg0, %c1_i32 : i32
    %1 = arith.addi %0, %arg2 : i32
    %c0_i32 = arith.constant 0 : i32
    %c0_i32_0 = arith.constant 0 : i32
    return %arg1, %1, %c0_i32 : i32, i32, i32
  }
  func.func @transform_4(%arg0: i32, %arg1: i32, %arg2: i32) -> (i32, i32, i32) {
    %c1_i32 = arith.constant 1 : i32
    %0 = arith.muli %arg0, %c1_i32 : i32
    %1 = arith.addi %0, %arg2 : i32
    %c0_i32 = arith.constant 0 : i32
    %c0_i32_0 = arith.constant 0 : i32
    return %arg1, %1, %c0_i32 : i32, i32, i32
  }
  func.func @transform_5(%arg0: i32, %arg1: i32, %arg2: i32) -> (i32, i32, i32) {
    %c1_i32 = arith.constant 1 : i32
    %0 = arith.muli %arg0, %c1_i32 : i32
    %1 = arith.addi %0, %arg2 : i32
    %c0_i32 = arith.constant 0 : i32
    %c0_i32_0 = arith.constant 0 : i32
    return %arg1, %1, %c0_i32 : i32, i32, i32
  }
  func.func @transform_6(%arg0: i32, %arg1: i32, %arg2: i32) -> (i32, i32, i32) {
    %c1_i32 = arith.constant 1 : i32
    %0 = arith.muli %arg0, %c1_i32 : i32
    %1 = arith.addi %0, %arg2 : i32
    %c0_i32 = arith.constant 0 : i32
    %c0_i32_0 = arith.constant 0 : i32
    return %arg1, %1, %c0_i32 : i32, i32, i32
  }
  func.func @transform_7(%arg0: i32, %arg1: i32, %arg2: i32) -> (i32, i32, i32) {
    %c1_i32 = arith.constant 1 : i32
    %0 = arith.muli %arg0, %c1_i32 : i32
    %1 = arith.addi %0, %arg2 : i32
    %c0_i32 = arith.constant 0 : i32
    %c0_i32_0 = arith.constant 0 : i32
    return %arg1, %1, %c0_i32 : i32, i32, i32
  }
  func.func @transform_8(%arg0: i32, %arg1: i32, %arg2: i32) -> (i32, i32, i32, i32) {
    %c2_i32 = arith.constant 2 : i32
    %0 = arith.muli %arg0, %c2_i32 : i32
    %1 = arith.addi %0, %arg1 : i32
    %c0_i32 = arith.constant 0 : i32
    %c0_i32_0 = arith.constant 0 : i32
    %c0_i32_1 = arith.constant 0 : i32
    %c0_i32_2 = arith.constant 0 : i32
    return %1, %c0_i32, %c0_i32_0, %c0_i32_1 : i32, i32, i32, i32
  }
}

</mosaic_0001>

<llo_original>
// kernel: text_loss.1
$region0: #{text_loss.1}
  #allocation0 [shape = 'u32[]', space=smem, size = 0x4, offset = 0x4, fixed_abs, tag = 'smem constant byte address 0x4 - core index']
  #allocation1 [shape = 'u32[144,128]{1,0:T(1,128)}', space=vmem, size = 0x12000, scoped, tag = 'internal scratch']
  %s0 = inlined_call_operand.vmem [shape: f32[2,7,32,128], index: 0, kind: input, shape index: {}]
  %s1 = inlined_call_operand.vmem [shape: s8[2,32,128], index: 1, kind: input, shape index: {}]
  %s2 = inlined_call_operand.vmem [shape: s8[2,32,128], index: 2, kind: input, shape index: {}]
  %s3 = inlined_call_operand.vmem [shape: s8[2,32,128], index: 3, kind: input, shape index: {}]
  %s4 = inlined_call_operand.vmem [shape: f32[2,32,128], index: 4, kind: input, shape index: {}]
  %s5 = inlined_call_operand.vmem [shape: f32[2,32,128], index: 5, kind: input, shape index: {}]
  %s6 = inlined_call_operand.vmem [shape: f32[2,32,128], index: 6, kind: input, shape index: {}]
  %s7 = inlined_call_operand.vmem [shape: f32[2,32,128], index: 7, kind: output, shape index: {0}]
  %s8 = inlined_call_operand.vmem [shape: f32[2,9,8,128], index: 8, kind: output, shape index: {1}]
  %9 = xla_tuple %s7, %s8
  %s10 = sld [smem:[#allocation0]]
  $region73: #{text_loss.1} parent=0
    _
  %s12 = ssub.s32 1, %s10
  %s13 = scalar_select 0, %s12, %s10
  loop: start=0, step=1, limit=4
  $region2: #{text_loss.1} parent=0 // loop_pre_header
    _
  $region3: #{text_loss.1} parent=0 // loop_header
    %s15 = sphi 0, %s19
    %p16 = scmp.ge.s32.totalorder %s15, 4
    %s22 = sphi 0, %s41
    %s23 = sphi 0, %s37
    %s24 = sphi 0, %s33
    %s25 = sphi 0, %s22
    %s26 = sphi 0, %s23
    %s27 = sphi 0, %s24
    %s28 = sphi 0, %s25
    %s29 = sphi 0, %s26
    %s30 = sphi 0, %s27
    %s48 = sphi 0, %s50
    %s51 = sphi 0, %s48
    %s52 = sphi 0, %s51
    %s68 = sphi 0, %s52
    %s78 = sphi 0, %s80
    %s81 = sphi 0, %s78
    %s82 = sphi 0, %s81
    %s98 = sphi 0, %s82
    %s108 = sphi 0, %s110
    %s111 = sphi 0, %s108
    %s112 = sphi 0, %s111
    %s128 = sphi 0, %s112
    %s138 = sphi 0, %s140
    %s141 = sphi 0, %s138
    %s142 = sphi 0, %s141
    %s158 = sphi 0, %s142
    %s168 = sphi 0, %s170
    %s171 = sphi 0, %s168
    %s172 = sphi 0, %s171
    %s188 = sphi 0, %s172
    %s198 = sphi 0, %s200
    %s201 = sphi 0, %s198
    %s202 = sphi 0, %s201
    %s218 = sphi 0, %s202
    %s228 = sphi 0, %s230
    %s231 = sphi 0, %s228
    %s232 = sphi 0, %s231
    %s248 = sphi 0, %s232
    %s258 = sphi 0, %s260
    %s261 = sphi 0, %s258
    %s262 = sphi 0, %s261
    %s278 = sphi 0, %s262
    %s288 = sphi 0, %s290
    %s291 = sphi 0, %s288
    %s292 = sphi 0, %s291
    %s308 = sphi 0, %s292
  $region4: #{text_loss.1} parent=0 // loop_header_branch
    %18 = sbr.rel (%p16) target = $region8
  $region5: #{text_loss.1} parent=0 // loop_body
    %s20 = ssub.s32 %s15, 1
    %s21 = ssub.s32 %s15, 2
    %s31 = sadd.s32 1, %s24
    %p32 = scmp.ge.s32.totalorder %s31, 1
    %s33 = scalar_select %p32, 0, %s31
    %s34 = sadd.s32 1, %s23
    %s35 = scalar_select %p32, %s34, %s23
    %p36 = scmp.ge.s32.totalorder %s35, 2
    %s37 = scalar_select %p36, 0, %s35
    %s38 = sadd.s32 1, %s22
    %s39 = scalar_select %p36, %s38, %s22
    %p40 = scmp.ge.s32.totalorder %s39, 1
    %s41 = scalar_select %p40, 0, %s39
    %s42 = sadd.s32 %s22, %s24
    %s43 = sadd.s32 %s41, %s33
    %s44 = ssub.s32 %s23, %s37
    %s45 = ssub.s32 %s42, %s43
    %s46 = sor.u32 %s44, %s45
    %p47 = scmp.eq.s32.totalorder %s46, 0
    %s49 = sadd.s32 %s48, 1
    %s50 = scalar_select %p47, %s48, %s49
    %p53 = pneg %p47
    %p54 = scmp.eq.s32.totalorder %s15, 1
    %p55 = por %p53, %p54
    %p56 = scmp.ne.s32.totalorder %s48, %s51
    %p57 = scmp.eq.s32.totalorder %s15, 0
    %p58 = por %p56, %p57
    %p59 = scmp.ne.s32.totalorder %s48, %s51
    %p60 = scmp.eq.s32.totalorder %s20, 1
    %p61 = por %p59, %p60
    %p62 = scmp.ne.s32.totalorder %s51, %s52
    %p63 = scmp.eq.s32.totalorder %s20, 0
    %p64 = por %p62, %p63
    %p65 = scmp.ne.s32.totalorder %s51, %s52
    %p66 = scmp.eq.s32.totalorder %s21, 1
    %p67 = por %p65, %p66
    %p69 = scmp.ne.s32.totalorder %s52, %s68
    %p70 = scmp.eq.s32.totalorder %s21, 0
    %p71 = por %p69, %p70
    %s72 = sadd.s32 %s22, %s24
    %s73 = sadd.s32 %s41, %s33
    %s74 = ssub.s32 %s23, %s37
    %s75 = ssub.s32 %s72, %s73
    %s76 = sor.u32 %s74, %s75
    %p77 = scmp.eq.s32.totalorder %s76, 0
    %s79 = sadd.s32 %s78, 1
    %s80 = scalar_select %p77, %s78, %s79
    %p83 = pneg %p77
    %p84 = scmp.eq.s32.totalorder %s15, 1
    %p85 = por %p83, %p84
    %p86 = scmp.ne.s32.totalorder %s78, %s81
    %p87 = scmp.eq.s32.totalorder %s15, 0
    %p88 = por %p86, %p87
    %p89 = scmp.ne.s32.totalorder %s78, %s81
    %p90 = scmp.eq.s32.totalorder %s20, 1
    %p91 = por %p89, %p90
    %p92 = scmp.ne.s32.totalorder %s81, %s82
    %p93 = scmp.eq.s32.totalorder %s20, 0
    %p94 = por %p92, %p93
    %p95 = scmp.ne.s32.totalorder %s81, %s82
    %p96 = scmp.eq.s32.totalorder %s21, 1
    %p97 = por %p95, %p96
    %p99 = scmp.ne.s32.totalorder %s82, %s98
    %p100 = scmp.eq.s32.totalorder %s21, 0
    %p101 = por %p99, %p100
    %s102 = sadd.s32 %s22, %s24
    %s103 = sadd.s32 %s41, %s33
    %s104 = ssub.s32 %s23, %s37
    %s105 = ssub.s32 %s102, %s103
    %s106 = sor.u32 %s104, %s105
    %p107 = scmp.eq.s32.totalorder %s106, 0
    %s109 = sadd.s32 %s108, 1
    %s110 = scalar_select %p107, %s108, %s109
    %p113 = pneg %p107
    %p114 = scmp.eq.s32.totalorder %s15, 1
    %p115 = por %p113, %p114
    %p116 = scmp.ne.s32.totalorder %s108, %s111
    %p117 = scmp.eq.s32.totalorder %s15, 0
    %p118 = por %p116, %p117
    %p119 = scmp.ne.s32.totalorder %s108, %s111
    %p120 = scmp.eq.s32.totalorder %s20, 1
    %p121 = por %p119, %p120
    %p122 = scmp.ne.s32.totalorder %s111, %s112
    %p123 = scmp.eq.s32.totalorder %s20, 0
    %p124 = por %p122, %p123
    %p125 = scmp.ne.s32.totalorder %s111, %s112
    %p126 = scmp.eq.s32.totalorder %s21, 1
    %p127 = por %p125, %p126
    %p129 = scmp.ne.s32.totalorder %s112, %s128
    %p130 = scmp.eq.s32.totalorder %s21, 0
    %p131 = por %p129, %p130
    %s132 = sadd.s32 %s22, %s24
    %s133 = sadd.s32 %s41, %s33
    %s134 = ssub.s32 %s23, %s37
    %s135 = ssub.s32 %s132, %s133
    %s136 = sor.u32 %s134, %s135
    %p137 = scmp.eq.s32.totalorder %s136, 0
    %s139 = sadd.s32 %s138, 1
    %s140 = scalar_select %p137, %s138, %s139
    %p143 = pneg %p137
    %p144 = scmp.eq.s32.totalorder %s15, 1
    %p145 = por %p143, %p144
    %p146 = scmp.ne.s32.totalorder %s138, %s141
    %p147 = scmp.eq.s32.totalorder %s15, 0
    %p148 = por %p146, %p147
    %p149 = scmp.ne.s32.totalorder %s138, %s141
    %p150 = scmp.eq.s32.totalorder %s20, 1
    %p151 = por %p149, %p150
    %p152 = scmp.ne.s32.totalorder %s141, %s142
    %p153 = scmp.eq.s32.totalorder %s20, 0
    %p154 = por %p152, %p153
    %p155 = scmp.ne.s32.totalorder %s141, %s142
    %p156 = scmp.eq.s32.totalorder %s21, 1
    %p157 = por %p155, %p156
    %p159 = scmp.ne.s32.totalorder %s142, %s158
    %p160 = scmp.eq.s32.totalorder %s21, 0
    %p161 = por %p159, %p160
    %s162 = sadd.s32 %s22, %s24
    %s163 = sadd.s32 %s41, %s33
    %s164 = ssub.s32 %s23, %s37
    %s165 = ssub.s32 %s162, %s163
    %s166 = sor.u32 %s164, %s165
    %p167 = scmp.eq.s32.totalorder %s166, 0
    %s169 = sadd.s32 %s168, 1
    %s170 = scalar_select %p167, %s168, %s169
    %p173 = pneg %p167
    %p174 = scmp.eq.s32.totalorder %s15, 1
    %p175 = por %p173, %p174
    %p176 = scmp.ne.s32.totalorder %s168, %s171
    %p177 = scmp.eq.s32.totalorder %s15, 0
    %p178 = por %p176, %p177
    %p179 = scmp.ne.s32.totalorder %s168, %s171
    %p180 = scmp.eq.s32.totalorder %s20, 1
    %p181 = por %p179, %p180
    %p182 = scmp.ne.s32.totalorder %s171, %s172
    %p183 = scmp.eq.s32.totalorder %s20, 0
    %p184 = por %p182, %p183
    %p185 = scmp.ne.s32.totalorder %s171, %s172
    %p186 = scmp.eq.s32.totalorder %s21, 1
    %p187 = por %p185, %p186
    %p189 = scmp.ne.s32.totalorder %s172, %s188
    %p190 = scmp.eq.s32.totalorder %s21, 0
    %p191 = por %p189, %p190
    %s192 = sadd.s32 %s22, %s24
    %s193 = sadd.s32 %s41, %s33
    %s194 = ssub.s32 %s23, %s37
    %s195 = ssub.s32 %s192, %s193
    %s196 = sor.u32 %s194, %s195
    %p197 = scmp.eq.s32.totalorder %s196, 0
    %s199 = sadd.s32 %s198, 1
    %s200 = scalar_select %p197, %s198, %s199
    %p203 = pneg %p197
    %p204 = scmp.eq.s32.totalorder %s15, 1
    %p205 = por %p203, %p204
    %p206 = scmp.ne.s32.totalorder %s198, %s201
    %p207 = scmp.eq.s32.totalorder %s15, 0
    %p208 = por %p206, %p207
    %p209 = scmp.ne.s32.totalorder %s198, %s201
    %p210 = scmp.eq.s32.totalorder %s20, 1
    %p211 = por %p209, %p210
    %p212 = scmp.ne.s32.totalorder %s201, %s202
    %p213 = scmp.eq.s32.totalorder %s20, 0
    %p214 = por %p212, %p213
    %p215 = scmp.ne.s32.totalorder %s201, %s202
    %p216 = scmp.eq.s32.totalorder %s21, 1
    %p217 = por %p215, %p216
    %p219 = scmp.ne.s32.totalorder %s202, %s218
    %p220 = scmp.eq.s32.totalorder %s21, 0
    %p221 = por %p219, %p220
    %s222 = sadd.s32 %s22, %s24
    %s223 = sadd.s32 %s41, %s33
    %s224 = ssub.s32 %s23, %s37
    %s225 = ssub.s32 %s222, %s223
    %s226 = sor.u32 %s224, %s225
    %p227 = scmp.eq.s32.totalorder %s226, 0
    %s229 = sadd.s32 %s228, 1
    %s230 = scalar_select %p227, %s228, %s229
    %p233 = pneg %p227
    %p234 = scmp.eq.s32.totalorder %s15, 1
    %p235 = por %p233, %p234
    %p236 = scmp.ne.s32.totalorder %s228, %s231
    %p237 = scmp.eq.s32.totalorder %s15, 0
    %p238 = por %p236, %p237
    %p239 = scmp.ne.s32.totalorder %s228, %s231
    %p240 = scmp.eq.s32.totalorder %s20, 1
    %p241 = por %p239, %p240
    %p242 = scmp.ne.s32.totalorder %s231, %s232
    %p243 = scmp.eq.s32.totalorder %s20, 0
    %p244 = por %p242, %p243
    %p245 = scmp.ne.s32.totalorder %s231, %s232
    %p246 = scmp.eq.s32.totalorder %s21, 1
    %p247 = por %p245, %p246
    %p249 = scmp.ne.s32.totalorder %s232, %s248
    %p250 = scmp.eq.s32.totalorder %s21, 0
    %p251 = por %p249, %p250
    %s252 = sadd.s32 %s22, %s24
    %s253 = sadd.s32 %s41, %s33
    %s254 = ssub.s32 %s23, %s37
    %s255 = ssub.s32 %s252, %s253
    %s256 = sor.u32 %s254, %s255
    %p257 = scmp.eq.s32.totalorder %s256, 0
    %s259 = sadd.s32 %s258, 1
    %s260 = scalar_select %p257, %s258, %s259
    %p263 = pneg %p257
    %p264 = scmp.eq.s32.totalorder %s15, 1
    %p265 = por %p263, %p264
    %p266 = scmp.ne.s32.totalorder %s258, %s261
    %p267 = scmp.eq.s32.totalorder %s15, 0
    %p268 = por %p266, %p267
    %p269 = scmp.ne.s32.totalorder %s258, %s261
    %p270 = scmp.eq.s32.totalorder %s20, 1
    %p271 = por %p269, %p270
    %p272 = scmp.ne.s32.totalorder %s261, %s262
    %p273 = scmp.eq.s32.totalorder %s20, 0
    %p274 = por %p272, %p273
    %p275 = scmp.ne.s32.totalorder %s261, %s262
    %p276 = scmp.eq.s32.totalorder %s21, 1
    %p277 = por %p275, %p276
    %p279 = scmp.ne.s32.totalorder %s262, %s278
    %p280 = scmp.eq.s32.totalorder %s21, 0
    %p281 = por %p279, %p280
    %s282 = smul.u32 %s22, 2
    %s283 = sadd.s32 %s282, %s23
    %s284 = smul.u32 %s41, 2
    %s285 = sadd.s32 %s284, %s37
    %s286 = ssub.s32 %s283, %s285
    %p287 = scmp.eq.s32.totalorder %s286, 0
    %s289 = sadd.s32 %s288, 1
    %s290 = scalar_select %p287, %s288, %s289
    %p293 = pneg %p287
    %p294 = scmp.eq.s32.totalorder %s15, 1
    %p295 = por %p293, %p294
    %p296 = scmp.ne.s32.totalorder %s288, %s291
    %p297 = scmp.eq.s32.totalorder %s15, 0
    %p298 = por %p296, %p297
    %p299 = scmp.ne.s32.totalorder %s288, %s291
    %p300 = scmp.eq.s32.totalorder %s20, 1
    %p301 = por %p299, %p300
    %p302 = scmp.ne.s32.totalorder %s291, %s292
    %p303 = scmp.eq.s32.totalorder %s20, 0
    %p304 = por %p302, %p303
    %p305 = scmp.ne.s32.totalorder %s291, %s292
    %p306 = scmp.eq.s32.totalorder %s21, 1
    %p307 = por %p305, %p306
    %p309 = scmp.ne.s32.totalorder %s292, %s308
    %p310 = scmp.eq.s32.totalorder %s21, 0
    %p311 = por %p309, %p310
    %p312 = scmp.le.s32.totalorder 1, %s15
    %p313 = scmp.lt.s32.totalorder %s15, 3
    %p314 = pnand %p312, %p313
    %p315 = pneg %p314
    // Predicated region
    $region9: #{text_loss.1} parent=5 // pred_check
      _
    $region10: #{text_loss.1} parent=5 // pred_check_branch
      %317 = sbr.rel (%p314) target = $region12
    $region11: #{text_loss.1} parent=5 // pred_region
      %s318 = ssub.s32 %s15, 1
    $region12: #{text_loss.1} parent=5 // pred_fallthru
      _
    %p319 = scmp.lt.s32.totalorder %s15, 2
    // Predicated region
    $region13: #{text_loss.1} parent=5 // pred_check
      %p320 = pneg %p319
    $region14: #{text_loss.1} parent=5 // pred_check_branch
      %322 = sbr.rel (%p320) target = $region16
    $region15: #{text_loss.1} parent=5 // pred_region
      // Predicated region
      $region17: #{text_loss.1} parent=15 // pred_check
        %p323 = pneg %p58
      $region18: #{text_loss.1} parent=15 // pred_check_branch
        %325 = sbr.rel (%p323) target = $region20
      $region19: #{text_loss.1} parent=15 // pred_region
        %s326 = sadd.s32 %s22, %s24
        %s327 = smul.u32 4, %s326
        %p328 = scmp.lt.s32.totalorder %s23, 1
        %s329 = scalar_select %p328, %s23, 1
        %p330 = scmp.lt.s32.totalorder %s327, 3
        %s331 = scalar_select %p330, %s327, 3
        %s332 = smul.addr %s329, 28
        %s333 = sadd.s32 %s331, %s332
        %s334 = smul.addr %s333, 8
        %s335 = scalar_lea.vmem %s0, %s334
        %s336 = sadd.s32 %s22, %s24
        %s337 = smul.u32 4, %s336
      $region20: #{text_loss.1} parent=15 // pred_fallthru
        _
      // Predicated region
      $region21: #{text_loss.1} parent=15 // pred_check
        %p338 = pneg %p88
      $region22: #{text_loss.1} parent=15 // pred_check_branch
        %340 = sbr.rel (%p338) target = $region24
      $region23: #{text_loss.1} parent=15 // pred_region
        %s341 = sadd.s32 %s22, %s24
        %p342 = scmp.lt.s32.totalorder %s23, 1
        %s343 = scalar_select %p342, %s23, 1
        %p344 = scmp.lt.s32.totalorder %s341, 0
        %s345 = scalar_select %p344, %s341, 0
        %s346 = sadd.s32 %s345, %s343
        %s347 = smul.addr %s346, 8
        %s348 = scalar_lea.vmem %s1, %s347
        %s349 = sadd.s32 %s22, %s24
      $region24: #{text_loss.1} parent=15 // pred_fallthru
        _
      // Predicated region
      $region25: #{text_loss.1} parent=15 // pred_check
        %p350 = pneg %p118
      $region26: #{text_loss.1} parent=15 // pred_check_branch
        %352 = sbr.rel (%p350) target = $region28
      $region27: #{text_loss.1} parent=15 // pred_region
        %s353 = sadd.s32 %s22, %s24
        %p354 = scmp.lt.s32.totalorder %s23, 1
        %s355 = scalar_select %p354, %s23, 1
        %p356 = scmp.lt.s32.totalorder %s353, 0
        %s357 = scalar_select %p356, %s353, 0
        %s358 = sadd.s32 %s357, %s355
        %s359 = smul.addr %s358, 8
        %s360 = scalar_lea.vmem %s2, %s359
        %s361 = sadd.s32 %s22, %s24
      $region28: #{text_loss.1} parent=15 // pred_fallthru
        _
      // Predicated region
      $region29: #{text_loss.1} parent=15 // pred_check
        %p362 = pneg %p148
      $region30: #{text_loss.1} parent=15 // pred_check_branch
        %364 = sbr.rel (%p362) target = $region32
      $region31: #{text_loss.1} parent=15 // pred_region
        %s365 = sadd.s32 %s22, %s24
        %p366 = scmp.lt.s32.totalorder %s23, 1
        %s367 = scalar_select %p366, %s23, 1
        %p368 = scmp.lt.s32.totalorder %s365, 0
        %s369 = scalar_select %p368, %s365, 0
        %s370 = sadd.s32 %s369, %s367
        %s371 = smul.addr %s370, 8
        %s372 = scalar_lea.vmem %s3, %s371
        %s373 = sadd.s32 %s22, %s24
      $region32: #{text_loss.1} parent=15 // pred_fallthru
        _
      // Predicated region
      $region33: #{text_loss.1} parent=15 // pred_check
        %p374 = pneg %p178
      $region34: #{text_loss.1} parent=15 // pred_check_branch
        %376 = sbr.rel (%p374) target = $region36
      $region35: #{text_loss.1} parent=15 // pred_region
        %s377 = sadd.s32 %s22, %s24
        %s378 = smul.u32 4, %s377
        %p379 = scmp.lt.s32.totalorder %s23, 1
        %s380 = scalar_select %p379, %s23, 1
        %p381 = scmp.lt.s32.totalorder %s378, 3
        %s382 = scalar_select %p381, %s378, 3
        %s383 = smul.addr %s380, 4
        %s384 = sadd.s32 %s382, %s383
        %s385 = smul.addr %s384, 8
        %s386 = scalar_lea.vmem %s4, %s385
        %s387 = sadd.s32 %s22, %s24
        %s388 = smul.u32 4, %s387
      $region36: #{text_loss.1} parent=15 // pred_fallthru
        _
      // Predicated region
      $region37: #{text_loss.1} parent=15 // pred_check
        %p389 = pneg %p208
      $region38: #{text_loss.1} parent=15 // pred_check_branch
        %391 = sbr.rel (%p389) target = $region40
      $region39: #{text_loss.1} parent=15 // pred_region
        %s392 = sadd.s32 %s22, %s24
        %s393 = smul.u32 4, %s392
        %p394 = scmp.lt.s32.totalorder %s23, 1
        %s395 = scalar_select %p394, %s23, 1
        %p396 = scmp.lt.s32.totalorder %s393, 3
        %s397 = scalar_select %p396, %s393, 3
        %s398 = smul.addr %s395, 4
        %s399 = sadd.s32 %s397, %s398
        %s400 = smul.addr %s399, 8
        %s401 = scalar_lea.vmem %s5, %s400
        %s402 = sadd.s32 %s22, %s24
        %s403 = smul.u32 4, %s402
      $region40: #{text_loss.1} parent=15 // pred_fallthru
        _
      // Predicated region
      $region41: #{text_loss.1} parent=15 // pred_check
        %p404 = pneg %p238
      $region42: #{text_loss.1} parent=15 // pred_check_branch
        %406 = sbr.rel (%p404) target = $region44
      $region43: #{text_loss.1} parent=15 // pred_region
        %s407 = sadd.s32 %s22, %s24
        %s408 = smul.u32 4, %s407
        %p409 = scmp.lt.s32.totalorder %s23, 1
        %s410 = scalar_select %p409, %s23, 1
        %p411 = scmp.lt.s32.totalorder %s408, 3
        %s412 = scalar_select %p411, %s408, 3
        %s413 = smul.addr %s410, 4
        %s414 = sadd.s32 %s412, %s413
        %s415 = smul.addr %s414, 8
        %s416 = scalar_lea.vmem %s6, %s415
        %s417 = sadd.s32 %s22, %s24
        %s418 = smul.u32 4, %s417
      $region44: #{text_loss.1} parent=15 // pred_fallthru
        _
    $region16: #{text_loss.1} parent=5 // pred_fallthru
      _
    %p419 = scmp.le.s32.totalorder 1, %s15
    %p420 = scmp.lt.s32.totalorder %s15, 3
    %p421 = pnand %p419, %p420
    %p422 = pneg %p421
    // Predicated region
    $region45: #{text_loss.1} parent=5 // pred_check
      _
    $region46: #{text_loss.1} parent=5 // pred_check_branch
      %424 = sbr.rel (%p421) target = $region48
    $region47: #{text_loss.1} parent=5 // pred_region
      %s425 = ssub.s32 %s15, 1
      %s426 = sadd.s32 %s25, %s27
      %s427 = smul.u32 4, %s426
      %p428 = scmp.lt.s32.totalorder %s26, 1
      %s429 = scalar_select %p428, %s26, 1
      %p430 = scmp.lt.s32.totalorder %s427, 3
      %s431 = scalar_select %p430, %s427, 3
      %s432 = smul.addr %s429, 28
      %s433 = sadd.s32 %s431, %s432
      %s434 = smul.addr %s433, 8
      %s435 = scalar_lea.vmem %s0, %s434
      %p436 = pneg %p64
      %p437 = pneg %p61
      %s438 = sadd.s32 %s25, %s27
      %p439 = scmp.lt.s32.totalorder %s26, 1
      %s440 = scalar_select %p439, %s26, 1
      %p441 = scmp.lt.s32.totalorder %s438, 0
      %s442 = scalar_select %p441, %s438, 0
      %s443 = sadd.s32 %s442, %s440
      %s444 = smul.addr %s443, 8
      %s445 = scalar_lea.vmem %s1, %s444
      %p446 = pneg %p94
      %p447 = pneg %p91
      %s448 = sadd.s32 %s25, %s27
      %p449 = scmp.lt.s32.totalorder %s26, 1
      %s450 = scalar_select %p449, %s26, 1
      %p451 = scmp.lt.s32.totalorder %s448, 0
      %s452 = scalar_select %p451, %s448, 0
      %s453 = sadd.s32 %s452, %s450
      %s454 = smul.addr %s453, 8
      %s455 = scalar_lea.vmem %s2, %s454
      %p456 = pneg %p124
      %p457 = pneg %p121
      %s458 = sadd.s32 %s25, %s27
      %p459 = scmp.lt.s32.totalorder %s26, 1
      %s460 = scalar_select %p459, %s26, 1
      %p461 = scmp.lt.s32.totalorder %s458, 0
      %s462 = scalar_select %p461, %s458, 0
      %s463 = sadd.s32 %s462, %s460
      %s464 = smul.addr %s463, 8
      %s465 = scalar_lea.vmem %s3, %s464
      %p466 = pneg %p154
      %p467 = pneg %p151
      %s468 = sadd.s32 %s25, %s27
      %s469 = smul.u32 4, %s468
      %p470 = scmp.lt.s32.totalorder %s26, 1
      %s471 = scalar_select %p470, %s26, 1
      %p472 = scmp.lt.s32.totalorder %s469, 3
      %s473 = scalar_select %p472, %s469, 3
      %s474 = smul.addr %s471, 4
      %s475 = sadd.s32 %s473, %s474
      %s476 = smul.addr %s475, 8
      %s477 = scalar_lea.vmem %s4, %s476
      %p478 = pneg %p184
      %p479 = pneg %p181
      %s480 = sadd.s32 %s25, %s27
      %s481 = smul.u32 4, %s480
      %p482 = scmp.lt.s32.totalorder %s26, 1
      %s483 = scalar_select %p482, %s26, 1
      %p484 = scmp.lt.s32.totalorder %s481, 3
      %s485 = scalar_select %p484, %s481, 3
      %s486 = smul.addr %s483, 4
      %s487 = sadd.s32 %s485, %s486
      %s488 = smul.addr %s487, 8
      %s489 = scalar_lea.vmem %s5, %s488
      %p490 = pneg %p214
      %p491 = pneg %p211
      %s492 = sadd.s32 %s25, %s27
      %s493 = smul.u32 4, %s492
      %p494 = scmp.lt.s32.totalorder %s26, 1
      %s495 = scalar_select %p494, %s26, 1
      %p496 = scmp.lt.s32.totalorder %s493, 3
      %s497 = scalar_select %p496, %s493, 3
      %s498 = smul.addr %s495, 4
      %s499 = sadd.s32 %s497, %s498
      %s500 = smul.addr %s499, 8
      %s501 = scalar_lea.vmem %s6, %s500
      %p502 = pneg %p244
      %p503 = pneg %p241
      %p504 = pneg %p274
      %p505 = pneg %p271
      %s506 = sadd.s32 %s25, %s27
      %s507 = smul.u32 4, %s506
      %p508 = scmp.lt.s32.totalorder %s26, 1
      %s509 = scalar_select %p508, %s26, 1
      %p510 = scmp.lt.s32.totalorder %s507, 3
      %s511 = scalar_select %p510, %s507, 3
      %s512 = smul.addr %s509, 4
      %s513 = sadd.s32 %s511, %s512
      %s514 = smul.addr %s513, 8
      %s515 = scalar_lea.vmem %s7, %s514
      %p516 = pneg %p304
      %p517 = pneg %p301
      %s518 = smul.u32 %s25, 2
      %s519 = sadd.s32 %s518, %s26
      %p520 = scmp.lt.s32.totalorder %s519, 1
      %s521 = scalar_select %p520, %s519, 1
      %s522 = smul.addr %s521, 9
      %s523 = smul.addr %s522, 8
      %s524 = scalar_lea.vmem %s8, %s523
      %s525 = sadd.s32 %s25, %s27
      %s526 = smul.u32 4, %s525
      %p527 = scmp.lt.s32.totalorder %s26, 1
      %s528 = scalar_select %p527, %s26, 1
      %p529 = scmp.lt.s32.totalorder %s526, 3
      %s530 = scalar_select %p529, %s526, 3
      %s531 = smul.addr %s528, 28
      %s532 = sadd.s32 %s530, %s531
      %s533 = smul.addr %s532, 8
      %s534 = scalar_lea.vmem %s0, %s533
      %s535 = sadd.s32 %s25, %s27
      %s536 = smul.u32 4, %s535
      %s537 = sadd.s32 %s25, %s27
      %p538 = scmp.lt.s32.totalorder %s26, 1
      %s539 = scalar_select %p538, %s26, 1
      %p540 = scmp.lt.s32.totalorder %s537, 0
      %s541 = scalar_select %p540, %s537, 0
      %s542 = sadd.s32 %s541, %s539
      %s543 = smul.addr %s542, 8
      %s544 = scalar_lea.vmem %s1, %s543
      %s545 = sadd.s32 %s25, %s27
      %s546 = sadd.s32 %s25, %s27
      %p547 = scmp.lt.s32.totalorder %s26, 1
      %s548 = scalar_select %p547, %s26, 1
      %p549 = scmp.lt.s32.totalorder %s546, 0
      %s550 = scalar_select %p549, %s546, 0
      %s551 = sadd.s32 %s550, %s548
      %s552 = smul.addr %s551, 8
      %s553 = scalar_lea.vmem %s2, %s552
      %s554 = sadd.s32 %s25, %s27
      %s555 = sadd.s32 %s25, %s27
      %p556 = scmp.lt.s32.totalorder %s26, 1
      %s557 = scalar_select %p556, %s26, 1
      %p558 = scmp.lt.s32.totalorder %s555, 0
      %s559 = scalar_select %p558, %s555, 0
      %s560 = sadd.s32 %s559, %s557
      %s561 = smul.addr %s560, 8
      %s562 = scalar_lea.vmem %s3, %s561
      %s563 = sadd.s32 %s25, %s27
      %s564 = sadd.s32 %s25, %s27
      %s565 = smul.u32 4, %s564
      %p566 = scmp.lt.s32.totalorder %s26, 1
      %s567 = scalar_select %p566, %s26, 1
      %p568 = scmp.lt.s32.totalorder %s565, 3
      %s569 = scalar_select %p568, %s565, 3
      %s570 = smul.addr %s567, 4
      %s571 = sadd.s32 %s569, %s570
      %s572 = smul.addr %s571, 8
      %s573 = scalar_lea.vmem %s4, %s572
      %s574 = sadd.s32 %s25, %s27
      %s575 = smul.u32 4, %s574
      %s576 = sadd.s32 %s25, %s27
      %s577 = smul.u32 4, %s576
      %p578 = scmp.lt.s32.totalorder %s26, 1
      %s579 = scalar_select %p578, %s26, 1
      %p580 = scmp.lt.s32.totalorder %s577, 3
      %s581 = scalar_select %p580, %s577, 3
      %s582 = smul.addr %s579, 4
      %s583 = sadd.s32 %s581, %s582
      %s584 = smul.addr %s583, 8
      %s585 = scalar_lea.vmem %s5, %s584
      %s586 = sadd.s32 %s25, %s27
      %s587 = smul.u32 4, %s586
      %s588 = sadd.s32 %s25, %s27
      %s589 = smul.u32 4, %s588
      %p590 = scmp.lt.s32.totalorder %s26, 1
      %s591 = scalar_select %p590, %s26, 1
      %p592 = scmp.lt.s32.totalorder %s589, 3
      %s593 = scalar_select %p592, %s589, 3
      %s594 = smul.addr %s591, 4
      %s595 = sadd.s32 %s593, %s594
      %s596 = smul.addr %s595, 8
      %s597 = scalar_lea.vmem %s6, %s596
      %s598 = sadd.s32 %s25, %s27
      %s599 = smul.u32 4, %s598
      %s600 = sadd.s32 %s25, %s27
      %s601 = smul.u32 4, %s600
      %p602 = scmp.lt.s32.totalorder %s26, 1
      %s603 = scalar_select %p602, %s26, 1
      %p604 = scmp.lt.s32.totalorder %s601, 3
      %s605 = scalar_select %p604, %s601, 3
      %s606 = smul.addr %s603, 4
      %s607 = sadd.s32 %s605, %s606
      %s608 = smul.addr %s607, 8
      %s609 = scalar_lea.vmem %s7, %s608
      %s610 = sadd.s32 %s25, %s27
      %s611 = smul.u32 4, %s610
      %s612 = smul.u32 %s25, 2
      %s613 = sadd.s32 %s612, %s26
      %p614 = scmp.lt.s32.totalorder %s613, 1
      %s615 = scalar_select %p614, %s613, 1
      %s616 = smul.addr %s615, 9
      %s617 = smul.addr %s616, 8
      %s618 = scalar_lea.vmem %s8, %s617
      %s619 = smul.u32 %s25, 2
      %s620 = sadd.s32 %s619, %s26
      %p621 = scmp.eq.s32.totalorder %s27, 0
      // Predicated region
      $region49: #{text_loss.1} parent=47 // pred_check
        %p622 = pneg %p621
      $region50: #{text_loss.1} parent=47 // pred_check_branch
        %624 = sbr.rel (%p622) target = $region52
      $region51: #{text_loss.1} parent=47 // pred_region
        %625 = vst [vmem:[%s618] sm:$0xff] 0.0
        %626 = vst [vmem:[%s618 + $0x8] sm:$0xff] 0.0
        %627 = vst [vmem:[%s618 + $0x10] sm:$0xff] 0.0
        %628 = vst [vmem:[%s618 + $0x18] sm:$0xff] 0.0
        %629 = vst [vmem:[%s618 + $0x20] sm:$0xff] 0.0
        %630 = vst [vmem:[%s618 + $0x28] sm:$0xff] 0.0
        %631 = vst [vmem:[%s618 + $0x30] sm:$0xff] 0.0
        %632 = vst [vmem:[%s618 + $0x38] sm:$0xff] 0.0
        %633 = vst [vmem:[%s618 + $0x40] sm:$0xff] 0.0
      $region52: #{text_loss.1} parent=47 // pred_fallthru
        _
      %v634 = vld [vmem:[%s534] sm:$0xff]
      %v635 = vld [vmem:[%s534 + $0x8] sm:$0xff]
      %v636 = vld [vmem:[%s534 + $0x10] sm:$0xff]
      %v637 = vld [vmem:[%s534 + $0x18] sm:$0xff]
      %s638 = sadd.s32 0, 32
      %s639 = scalar_lea.vmem %s534, %s638
      %v640 = vld [vmem:[%s639] sm:$0xff]
      %v641 = vld [vmem:[%s639 + $0x8] sm:$0xff]
      %v642 = vld [vmem:[%s639 + $0x10] sm:$0xff]
      %v643 = vld [vmem:[%s639 + $0x18] sm:$0xff]
      %s644 = sadd.s32 0, 64
      %s645 = scalar_lea.vmem %s534, %s644
      %v646 = vld [vmem:[%s645] sm:$0xff]
      %v647 = vld [vmem:[%s645 + $0x8] sm:$0xff]
      %v648 = vld [vmem:[%s645 + $0x10] sm:$0xff]
      %v649 = vld [vmem:[%s645 + $0x18] sm:$0xff]
      %s650 = sadd.s32 0, 96
      %s651 = scalar_lea.vmem %s534, %s650
      %v652 = vld [vmem:[%s651] sm:$0xff]
      %v653 = vld [vmem:[%s651 + $0x8] sm:$0xff]
      %v654 = vld [vmem:[%s651 + $0x10] sm:$0xff]
      %v655 = vld [vmem:[%s651 + $0x18] sm:$0xff]
      %s656 = sadd.s32 0, 128
      %s657 = scalar_lea.vmem %s534, %s656
      %v658 = vld [vmem:[%s657] sm:$0xff]
      %v659 = vld [vmem:[%s657 + $0x8] sm:$0xff]
      %v660 = vld [vmem:[%s657 + $0x10] sm:$0xff]
      %v661 = vld [vmem:[%s657 + $0x18] sm:$0xff]
      %s662 = sadd.s32 0, 160
      %s663 = scalar_lea.vmem %s534, %s662
      %v664 = vld [vmem:[%s663] sm:$0xff]
      %v665 = vld [vmem:[%s663 + $0x8] sm:$0xff]
      %v666 = vld [vmem:[%s663 + $0x10] sm:$0xff]
      %v667 = vld [vmem:[%s663 + $0x18] sm:$0xff]
      %s668 = sadd.s32 0, 192
      %s669 = scalar_lea.vmem %s534, %s668
      %v670 = vld [vmem:[%s669] sm:$0xff]
      %v671 = vld [vmem:[%s669 + $0x8] sm:$0xff]
      %v672 = vld [vmem:[%s669 + $0x10] sm:$0xff]
      %v673 = vld [vmem:[%s669 + $0x18] sm:$0xff]
      %v674 = vld [vmem:[%s544] sm:$0xff]
      %v675 = vunpack.c.0.s8 %v674
      %v676 = vunpack.c.1.s8 %v674
      %v677 = vunpack.c.2.s8 %v674
      %v678 = vunpack.c.3.s8 %v674
      %v679 = vcvt.s32.f32 %v675
      %v680 = vcvt.s32.f32 %v676
      %v681 = vcvt.s32.f32 %v677
      %v682 = vcvt.s32.f32 %v678
      %v683 = vld [vmem:[%s553] sm:$0xff]
      %v684 = vunpack.c.0.s8 %v683
      %v685 = vunpack.c.1.s8 %v683
      %v686 = vunpack.c.2.s8 %v683
      %v687 = vunpack.c.3.s8 %v683
      %v688 = vcvt.s32.f32 %v684
      %v689 = vcvt.s32.f32 %v685
      %v690 = vcvt.s32.f32 %v686
      %v691 = vcvt.s32.f32 %v687
      %v692 = vld [vmem:[%s562] sm:$0xff]
      %v693 = vunpack.c.0.s8 %v692
      %v694 = vunpack.c.1.s8 %v692
      %v695 = vunpack.c.2.s8 %v692
      %v696 = vunpack.c.3.s8 %v692
      %v697 = vcvt.s32.f32 %v693
      %v698 = vcvt.s32.f32 %v694
      %v699 = vcvt.s32.f32 %v695
      %v700 = vcvt.s32.f32 %v696
      %v701 = vld [vmem:[%s573] sm:$0xff]
      %v702 = vld [vmem:[%s573 + $0x8] sm:$0xff]
      %v703 = vld [vmem:[%s573 + $0x10] sm:$0xff]
      %v704 = vld [vmem:[%s573 + $0x18] sm:$0xff]
      %v705 = vld [vmem:[%s585] sm:$0xff]
      %v706 = vld [vmem:[%s585 + $0x8] sm:$0xff]
      %v707 = vld [vmem:[%s585 + $0x10] sm:$0xff]
      %v708 = vld [vmem:[%s585 + $0x18] sm:$0xff]
      %v709 = vld [vmem:[%s597] sm:$0xff]
      %v710 = vld [vmem:[%s597 + $0x8] sm:$0xff]
      %v711 = vld [vmem:[%s597 + $0x10] sm:$0xff]
      %v712 = vld [vmem:[%s597 + $0x18] sm:$0xff]
      %v713 = vsub.f32 %v634, %v640
      %v714 = vsub.f32 %v635, %v641
      %v715 = vsub.f32 %v636, %v642
      %v716 = vsub.f32 %v637, %v643
      %vm717 = vcmp.gt.f32.partialorder %v679, 0.5
      %vm718 = vcmp.gt.f32.partialorder %v680, 0.5
      %vm719 = vcmp.gt.f32.partialorder %v681, 0.5
      %vm720 = vcmp.gt.f32.partialorder %v682, 0.5
      %v721 = vsub.f32 0.0, %v713
      %v722 = vsub.f32 0.0, %v714
      %v723 = vsub.f32 0.0, %v715
      %v724 = vsub.f32 0.0, %v716
      %v725 = vsel %vm717, %v713, %v721
      %v726 = vsel %vm718, %v714, %v722
      %v727 = vsel %vm719, %v715, %v723
      %v728 = vsel %vm720, %v716, %v724
      %v729 = vmax.f32 %v725, 0.0
      %v730 = vmax.f32 %v726, 0.0
      %v731 = vmax.f32 %v727, 0.0
      %v732 = vmax.f32 %v728, 0.0
      %v733 = vand.u32 2147483647, %v725
      %v734 = vand.u32 2147483647, %v726
      %v735 = vand.u32 2147483647, %v727
      %v736 = vand.u32 2147483647, %v728
      %v737 = vsub.f32 0.0, %v733
      %v738 = vsub.f32 0.0, %v734
      %v739 = vsub.f32 0.0, %v735
      %v740 = vsub.f32 0.0, %v736
      %v741 = vmul.f32 %v737, 1.442695
      %v742 = vpow.pop %v741
      %v743 = vmul.f32 %v738, 1.442695
      %v744 = vpow.pop %v743
      %v745 = vmul.f32 %v739, 1.442695
      %v746 = vpow.pop %v745
      %v747 = vmul.f32 %v740, 1.442695
      %v748 = vpow.pop %v747
      %v749 = vadd.f32 %v742, 1.0
      %v750 = vadd.f32 %v744, 1.0
      %v751 = vadd.f32 %v746, 1.0
      %v752 = vadd.f32 %v748, 1.0
      %v753 = vlog2.pop %v749
      %v754 = vmul.f32 %v753, 0.6931472
      %v755 = vlog2.pop %v750
      %v756 = vmul.f32 %v755, 0.6931472
      %v757 = vlog2.pop %v751
      %v758 = vmul.f32 %v757, 0.6931472
      %v759 = vlog2.pop %v752
      %v760 = vmul.f32 %v759, 0.6931472
      %v761 = vadd.f32 %v729, %v754
      %v762 = vadd.f32 %v730, %v756
      %v763 = vadd.f32 %v731, %v758
      %v764 = vadd.f32 %v732, %v760
      %v765 = vsub.f32 %v646, %v652
      %v766 = vsub.f32 %v647, %v653
      %v767 = vsub.f32 %v648, %v654
      %v768 = vsub.f32 %v649, %v655
      %vm769 = vcmp.gt.f32.partialorder %v688, 0.5
      %vm770 = vcmp.gt.f32.partialorder %v689, 0.5
      %vm771 = vcmp.gt.f32.partialorder %v690, 0.5
      %vm772 = vcmp.gt.f32.partialorder %v691, 0.5
      %v773 = vsub.f32 0.0, %v765
      %v774 = vsub.f32 0.0, %v766
      %v775 = vsub.f32 0.0, %v767
      %v776 = vsub.f32 0.0, %v768
      %v777 = vsel %vm769, %v765, %v773
      %v778 = vsel %vm770, %v766, %v774
      %v779 = vsel %vm771, %v767, %v775
      %v780 = vsel %vm772, %v768, %v776
      %v781 = vmax.f32 %v777, 0.0
      %v782 = vmax.f32 %v778, 0.0
      %v783 = vmax.f32 %v779, 0.0
      %v784 = vmax.f32 %v780, 0.0
      %v785 = vand.u32 2147483647, %v777
      %v786 = vand.u32 2147483647, %v778
      %v787 = vand.u32 2147483647, %v779
      %v788 = vand.u32 2147483647, %v780
      %v789 = vsub.f32 0.0, %v785
      %v790 = vsub.f32 0.0, %v786
      %v791 = vsub.f32 0.0, %v787
      %v792 = vsub.f32 0.0, %v788
      %v793 = vmul.f32 %v789, 1.442695
      %v794 = vpow.pop %v793
      %v795 = vmul.f32 %v790, 1.442695
      %v796 = vpow.pop %v795
      %v797 = vmul.f32 %v791, 1.442695
      %v798 = vpow.pop %v797
      %v799 = vmul.f32 %v792, 1.442695
      %v800 = vpow.pop %v799
      %v801 = vadd.f32 %v794, 1.0
      %v802 = vadd.f32 %v796, 1.0
      %v803 = vadd.f32 %v798, 1.0
      %v804 = vadd.f32 %v800, 1.0
      %v805 = vlog2.pop %v801
      %v806 = vmul.f32 %v805, 0.6931472
      %v807 = vlog2.pop %v802
      %v808 = vmul.f32 %v807, 0.6931472
      %v809 = vlog2.pop %v803
      %v810 = vmul.f32 %v809, 0.6931472
      %v811 = vlog2.pop %v804
      %v812 = vmul.f32 %v811, 0.6931472
      %v813 = vadd.f32 %v781, %v806
      %v814 = vadd.f32 %v782, %v808
      %v815 = vadd.f32 %v783, %v810
      %v816 = vadd.f32 %v784, %v812
      %v817 = vmul.f32 %v679, %v697
      %v818 = vmul.f32 %v680, %v698
      %v819 = vmul.f32 %v681, %v699
      %v820 = vmul.f32 %v682, %v700
      %v821 = vsub.f32 1.0, %v679
      %v822 = vsub.f32 1.0, %v680
      %v823 = vsub.f32 1.0, %v681
      %v824 = vsub.f32 1.0, %v682
      %v825 = vmul.f32 %v821, %v697
      %v826 = vmul.f32 %v822, %v698
      %v827 = vmul.f32 %v823, %v699
      %v828 = vmul.f32 %v824, %v700
      %vm829 = vcmp.gt.f32.partialorder %v825, 0.5
      %vm830 = vcmp.gt.f32.partialorder %v826, 0.5
      %vm831 = vcmp.gt.f32.partialorder %v827, 0.5
      %vm832 = vcmp.gt.f32.partialorder %v828, 0.5
      %v833 = vsel %vm829, %v761, -1.0
      %v834 = vsel %vm830, %v762, -1.0
      %v835 = vsel %vm831, %v763, -1.0
      %v836 = vsel %vm832, %v764, -1.0
      %837 = vst [vmem:[%s609] sm:$0xff] %v833
      %838 = vst [vmem:[%s609 + $0x8] sm:$0xff] %v834
      %839 = vst [vmem:[%s609 + $0x10] sm:$0xff] %v835
      %840 = vst [vmem:[%s609 + $0x18] sm:$0xff] %v836
      %v841 = vmul.f32 %v658, %v658
      %v842 = vmul.f32 %v659, %v659
      %v843 = vmul.f32 %v660, %v660
      %v844 = vmul.f32 %v661, %v661
      %v845 = vmul.f32 %v664, %v664
      %v846 = vmul.f32 %v665, %v665
      %v847 = vmul.f32 %v666, %v666
      %v848 = vmul.f32 %v667, %v667
      %v849 = vadd.f32 %v841, %v845
      %v850 = vadd.f32 %v842, %v846
      %v851 = vadd.f32 %v843, %v847
      %v852 = vadd.f32 %v844, %v848
      %v853 = vrsqrt.pop %v849
      %v854 = vrsqrt.pop %v850
      %v855 = vrsqrt.pop %v851
      %v856 = vrsqrt.pop %v852
      %v857 = vmul.f32 %v658, %v853
      %v858 = vmul.f32 %v659, %v854
      %v859 = vmul.f32 %v660, %v855
      %v860 = vmul.f32 %v661, %v856
      %v861 = vmul.f32 %v664, %v853
      %v862 = vmul.f32 %v665, %v854
      %v863 = vmul.f32 %v666, %v855
      %v864 = vmul.f32 %v667, %v856
      %v865 = vsel %vm769, %v709, 1.0
      %v866 = vsel %vm770, %v710, 1.0
      %v867 = vsel %vm771, %v711, 1.0
      %v868 = vsel %vm772, %v712, 1.0
      %v869 = vrcp.pop %v865
      %v870 = vrcp.pop %v866
      %v871 = vrcp.pop %v867
      %v872 = vrcp.pop %v868
      %v873 = vmul.f32 %v670, %v869
      %v874 = vmul.f32 %v671, %v870
      %v875 = vmul.f32 %v672, %v871
      %v876 = vmul.f32 %v673, %v872
      %v877 = vmul.f32 %v817, %v761
      %v878 = vmul.f32 %v818, %v762
      %v879 = vmul.f32 %v819, %v763
      %v880 = vmul.f32 %v820, %v764
      %v881 = vmul.f32 %v817, %v813
      %v882 = vmul.f32 %v818, %v814
      %v883 = vmul.f32 %v819, %v815
      %v884 = vmul.f32 %v820, %v816
      %v885 = vsub.f32 %v873, 1.0
      %v886 = vsub.f32 %v874, 1.0
      %v887 = vsub.f32 %v875, 1.0
      %v888 = vsub.f32 %v876, 1.0
      %v889 = vand.u32 2147483647, %v885
      %v890 = vand.u32 2147483647, %v886
      %v891 = vand.u32 2147483647, %v887
      %v892 = vand.u32 2147483647, %v888
      %vm893 = vcmp.lt.f32.partialorder %v889, 1.0
      %vm894 = vcmp.lt.f32.partialorder %v890, 1.0
      %vm895 = vcmp.lt.f32.partialorder %v891, 1.0
      %vm896 = vcmp.lt.f32.partialorder %v892, 1.0
      %v897 = vmul.f32 %v889, 0.5
      %v898 = vmul.f32 %v890, 0.5
      %v899 = vmul.f32 %v891, 0.5
      %v900 = vmul.f32 %v892, 0.5
      %v901 = vmul.f32 %v897, %v889
      %v902 = vmul.f32 %v898, %v890
      %v903 = vmul.f32 %v899, %v891
      %v904 = vmul.f32 %v900, %v892
      %v905 = vsub.f32 %v889, 0.5
      %v906 = vsub.f32 %v890, 0.5
      %v907 = vsub.f32 %v891, 0.5
      %v908 = vsub.f32 %v892, 0.5
      %v909 = vsel %vm893, %v901, %v905
      %v910 = vsel %vm894, %v902, %v906
      %v911 = vsel %vm895, %v903, %v907
      %v912 = vsel %vm896, %v904, %v908
      %v913 = vmul.f32 %v688, %v909
      %v914 = vmul.f32 %v689, %v910
      %v915 = vmul.f32 %v690, %v911
      %v916 = vmul.f32 %v691, %v912
      %v917 = vsub.f32 %v857, %v701
      %v918 = vsub.f32 %v858, %v702
      %v919 = vsub.f32 %v859, %v703
      %v920 = vsub.f32 %v860, %v704
      %v921 = vand.u32 2147483647, %v917
      %v922 = vand.u32 2147483647, %v918
      %v923 = vand.u32 2147483647, %v919
      %v924 = vand.u32 2147483647, %v920
      %vm925 = vcmp.lt.f32.partialorder %v921, 1.0
      %vm926 = vcmp.lt.f32.partialorder %v922, 1.0
      %vm927 = vcmp.lt.f32.partialorder %v923, 1.0
      %vm928 = vcmp.lt.f32.partialorder %v924, 1.0
      %v929 = vmul.f32 %v921, 0.5
      %v930 = vmul.f32 %v922, 0.5
      %v931 = vmul.f32 %v923, 0.5
      %v932 = vmul.f32 %v924, 0.5
      %v933 = vmul.f32 %v929, %v921
      %v934 = vmul.f32 %v930, %v922
      %v935 = vmul.f32 %v931, %v923
      %v936 = vmul.f32 %v932, %v924
      %v937 = vsub.f32 %v921, 0.5
      %v938 = vsub.f32 %v922, 0.5
      %v939 = vsub.f32 %v923, 0.5
      %v940 = vsub.f32 %v924, 0.5
      %v941 = vsel %vm925, %v933, %v937
      %v942 = vsel %vm926, %v934, %v938
      %v943 = vsel %vm927, %v935, %v939
      %v944 = vsel %vm928, %v936, %v940
      %v945 = vsel %vm769, %v941, 0.0
      %v946 = vsel %vm770, %v942, 0.0
      %v947 = vsel %vm771, %v943, 0.0
      %v948 = vsel %vm772, %v944, 0.0
      %v949 = vsub.f32 %v861, %v705
      %v950 = vsub.f32 %v862, %v706
      %v951 = vsub.f32 %v863, %v707
      %v952 = vsub.f32 %v864, %v708
      %v953 = vand.u32 2147483647, %v949
      %v954 = vand.u32 2147483647, %v950
      %v955 = vand.u32 2147483647, %v951
      %v956 = vand.u32 2147483647, %v952
      %vm957 = vcmp.lt.f32.partialorder %v953, 1.0
      %vm958 = vcmp.lt.f32.partialorder %v954, 1.0
      %vm959 = vcmp.lt.f32.partialorder %v955, 1.0
      %vm960 = vcmp.lt.f32.partialorder %v956, 1.0
      %v961 = vmul.f32 %v953, 0.5
      %v962 = vmul.f32 %v954, 0.5
      %v963 = vmul.f32 %v955, 0.5
      %v964 = vmul.f32 %v956, 0.5
      %v965 = vmul.f32 %v961, %v953
      %v966 = vmul.f32 %v962, %v954
      %v967 = vmul.f32 %v963, %v955
      %v968 = vmul.f32 %v964, %v956
      %v969 = vsub.f32 %v953, 0.5
      %v970 = vsub.f32 %v954, 0.5
      %v971 = vsub.f32 %v955, 0.5
      %v972 = vsub.f32 %v956, 0.5
      %v973 = vsel %vm957, %v965, %v969
      %v974 = vsel %vm958, %v966, %v970
      %v975 = vsel %vm959, %v967, %v971
      %v976 = vsel %vm960, %v968, %v972
      %v977 = vsel %vm769, %v973, 0.0
      %v978 = vsel %vm770, %v974, 0.0
      %v979 = vsel %vm771, %v975, 0.0
      %v980 = vsel %vm772, %v976, 0.0
      %v981 = vmul.f32 %v697, %v688
      %v982 = vmul.f32 %v698, %v689
      %v983 = vmul.f32 %v699, %v690
      %v984 = vmul.f32 %v700, %v691
      %v985 = vadd.f32 %v817, %v818
      %v986 = vadd.f32 %v985, %v819
      %v987 = vadd.f32 %v986, %v820
      %v988 = vadd.f32 %v987, 0.0
      %v989 = vadd.f32 %v877, %v878
      %v990 = vadd.f32 %v989, %v879
      %v991 = vadd.f32 %v990, %v880
      %v992 = vadd.f32 %v991, 0.0
      %v993 = vadd.f32 %v697, %v698
      %v994 = vadd.f32 %v993, %v699
      %v995 = vadd.f32 %v994, %v700
      %v996 = vadd.f32 %v995, 0.0
      %v997 = vadd.f32 %v881, %v882
      %v998 = vadd.f32 %v997, %v883
      %v999 = vadd.f32 %v998, %v884
      %v1000 = vadd.f32 %v999, 0.0
      %v1001 = vadd.f32 %v688, %v689
      %v1002 = vadd.f32 %v1001, %v690
      %v1003 = vadd.f32 %v1002, %v691
      %v1004 = vadd.f32 %v1003, 0.0
      %v1005 = vadd.f32 %v913, %v914
      %v1006 = vadd.f32 %v1005, %v915
      %v1007 = vadd.f32 %v1006, %v916
      %v1008 = vadd.f32 %v1007, 0.0
      %v1009 = vadd.f32 %v945, %v946
      %v1010 = vadd.f32 %v1009, %v947
      %v1011 = vadd.f32 %v1010, %v948
      %v1012 = vadd.f32 %v1011, 0.0
      %v1013 = vadd.f32 %v977, %v978
      %v1014 = vadd.f32 %v1013, %v979
      %v1015 = vadd.f32 %v1014, %v980
      %v1016 = vadd.f32 %v1015, 0.0
      %v1017 = vadd.f32 %v981, %v982
      %v1018 = vadd.f32 %v1017, %v983
      %v1019 = vadd.f32 %v1018, %v984
      %v1020 = vadd.f32 %v1019, 0.0
      %v1021 = vld [vmem:[%s618] sm:$0xff]
      %v1022 = vadd.f32 %v1021, %v988
      %1023 = vst [vmem:[%s618] sm:$0xff] %v1022
      %s1024 = scalar_lea.vmem %s618, 8
      %v1025 = vld [vmem:[%s1024] sm:$0xff]
      %v1026 = vadd.f32 %v1025, %v992
      %1027 = vst [vmem:[%s1024] sm:$0xff] %v1026
      %s1028 = scalar_lea.vmem %s618, 16
      %v1029 = vld [vmem:[%s1028] sm:$0xff]
      %v1030 = vadd.f32 %v1029, %v996
      %1031 = vst [vmem:[%s1028] sm:$0xff] %v1030
      %s1032 = scalar_lea.vmem %s618, 24
      %v1033 = vld [vmem:[%s1032] sm:$0xff]
      %v1034 = vadd.f32 %v1033, %v1000
      %1035 = vst [vmem:[%s1032] sm:$0xff] %v1034
      %s1036 = scalar_lea.vmem %s618, 32
      %v1037 = vld [vmem:[%s1036] sm:$0xff]
      %v1038 = vadd.f32 %v1037, %v1004
      %1039 = vst [vmem:[%s1036] sm:$0xff] %v1038
      %s1040 = scalar_lea.vmem %s618, 40
      %v1041 = vld [vmem:[%s1040] sm:$0xff]
      %v1042 = vadd.f32 %v1041, %v1008
      %1043 = vst [vmem:[%s1040] sm:$0xff] %v1042
      %s1044 = scalar_lea.vmem %s618, 48
      %v1045 = vld [vmem:[%s1044] sm:$0xff]
      %v1046 = vadd.f32 %v1045, %v1012
      %1047 = vst [vmem:[%s1044] sm:$0xff] %v1046
      %s1048 = scalar_lea.vmem %s618, 56
      %v1049 = vld [vmem:[%s1048] sm:$0xff]
      %v1050 = vadd.f32 %v1049, %v1016
      %1051 = vst [vmem:[%s1048] sm:$0xff] %v1050
      %s1052 = scalar_lea.vmem %s618, 64
      %v1053 = vld [vmem:[%s1052] sm:$0xff]
      %v1054 = vadd.f32 %v1053, %v1020
      %1055 = vst [vmem:[%s1052] sm:$0xff] %v1054
      %s1056 = sadd.s32 %s25, %s27
      %s1057 = smul.u32 4, %s1056
      %p1058 = scmp.lt.s32.totalorder %s26, 1
      %s1059 = scalar_select %p1058, %s26, 1
      %p1060 = scmp.lt.s32.totalorder %s1057, 3
      %s1061 = scalar_select %p1060, %s1057, 3
      %s1062 = smul.addr %s1059, 4
      %s1063 = sadd.s32 %s1061, %s1062
      %s1064 = smul.addr %s1063, 8
      %s1065 = scalar_lea.vmem %s7, %s1064
      %s1066 = smul.u32 %s25, 2
      %s1067 = sadd.s32 %s1066, %s26
      %p1068 = scmp.lt.s32.totalorder %s1067, 1
      %s1069 = scalar_select %p1068, %s1067, 1
      %s1070 = smul.addr %s1069, 9
      %s1071 = smul.addr %s1070, 8
      %s1072 = scalar_lea.vmem %s8, %s1071
      // Predicated region
      $region53: #{text_loss.1} parent=47 // pred_check
        %p1073 = pneg %p271
      $region54: #{text_loss.1} parent=47 // pred_check_branch
        %1075 = sbr.rel (%p1073) target = $region56
      $region55: #{text_loss.1} parent=47 // pred_region
        %s1076 = sadd.s32 %s25, %s27
        %s1077 = smul.u32 4, %s1076
      $region56: #{text_loss.1} parent=47 // pred_fallthru
        _
      // Predicated region
      $region57: #{text_loss.1} parent=47 // pred_check
        %p1078 = pneg %p301
      $region58: #{text_loss.1} parent=47 // pred_check_branch
        %1080 = sbr.rel (%p1078) target = $region60
      $region59: #{text_loss.1} parent=47 // pred_region
        %s1081 = smul.u32 %s25, 2
        %s1082 = sadd.s32 %s1081, %s26
      $region60: #{text_loss.1} parent=47 // pred_fallthru
        _
    $region48: #{text_loss.1} parent=5 // pred_fallthru
      _
    %p1083 = scmp.le.s32.totalorder 2, %s15
    // Predicated region
    $region61: #{text_loss.1} parent=5 // pred_check
      %p1084 = pneg %p1083
    $region62: #{text_loss.1} parent=5 // pred_check_branch
      %1086 = sbr.rel (%p1084) target = $region64
    $region63: #{text_loss.1} parent=5 // pred_region
      %s1087 = ssub.s32 %s15, 2
      // Predicated region
      $region65: #{text_loss.1} parent=63 // pred_check
        %p1088 = pneg %p277
      $region66: #{text_loss.1} parent=63 // pred_check_branch
        %1090 = sbr.rel (%p1088) target = $region68
      $region67: #{text_loss.1} parent=63 // pred_region
        %s1091 = sadd.s32 %s28, %s30
        %s1092 = smul.u32 4, %s1091
        %p1093 = scmp.lt.s32.totalorder %s29, 1
        %s1094 = scalar_select %p1093, %s29, 1
        %p1095 = scmp.lt.s32.totalorder %s1092, 3
        %s1096 = scalar_select %p1095, %s1092, 3
        %s1097 = smul.addr %s1094, 4
        %s1098 = sadd.s32 %s1096, %s1097
        %s1099 = smul.addr %s1098, 8
        %s1100 = scalar_lea.vmem %s7, %s1099
      $region68: #{text_loss.1} parent=63 // pred_fallthru
        _
      // Predicated region
      $region69: #{text_loss.1} parent=63 // pred_check
        %p1101 = pneg %p307
      $region70: #{text_loss.1} parent=63 // pred_check_branch
        %1103 = sbr.rel (%p1101) target = $region72
      $region71: #{text_loss.1} parent=63 // pred_region
        %s1104 = smul.u32 %s28, 2
        %s1105 = sadd.s32 %s1104, %s29
        %p1106 = scmp.lt.s32.totalorder %s1105, 1
        %s1107 = scalar_select %p1106, %s1105, 1
        %s1108 = smul.addr %s1107, 9
        %s1109 = smul.addr %s1108, 8
        %s1110 = scalar_lea.vmem %s8, %s1109
      $region72: #{text_loss.1} parent=63 // pred_fallthru
        _
    $region64: #{text_loss.1} parent=5 // pred_fallthru
      _
  $region6: #{text_loss.1} parent=0 // loop_footer
    %s19 = sadd.s32 1, %s15
  $region7: #{text_loss.1} parent=0 // loop_footer_branch
    %14 = sbr.rel target = $region3
  $region8: #{text_loss.1} parent=0 // loop_exit
    _

</llo_original>
